<compile_context>
chip_gen: v6e
topology: v6e:2x2x1
jax: 0.10.0
libtpu: 0.0.40
codegen_flags: <defaults>
</compile_context>

<pallas_src>
import jax
import jax.numpy as jnp
from jax.experimental import pallas as pl
from jax.experimental.pallas import tpu as pltpu


def _sae_kernel(x_ref, pre_b_ref, enc_ref, dec_ref,
                recon_ref, latent_ref, maxlat_ref):
    i = pl.program_id(1)                 # batch tile within this parallel slice
    j = pl.program_id(2)                 # feature tile (inner, sequential)
    block_nf = latent_ref.shape[-1]

    # encode: x is already centered (x - pre_b) and cast to bf16 in the wrapper.
    lat = jnp.dot(x_ref[...], enc_ref[...], preferred_element_type=jnp.float32)
    lat = jnp.maximum(lat, 0.0)                               # (block_b, block_nf) f32
    latent_ref[...] = lat.astype(latent_ref.dtype)            # bf16 writeback

    # decode: accumulate directly into the resident f32 recon output block
    # (its index_map ignores j), seeded with pre_b at the first feature tile.
    @pl.when(j == 0)
    def _():
        recon_ref[...] = jnp.broadcast_to(pre_b_ref[...], recon_ref.shape)

    recon_ref[...] += jnp.dot(lat.astype(jnp.bfloat16), dec_ref[...],
                              preferred_element_type=jnp.float32)

    # batch-wise running max of the f32 latent (taken before the bf16 downcast).
    # The (1, ft, block_nf) maxlat block is resident across the whole (batch, feature)
    # sweep of this parallel slice; relu latent >= 0, so zero-init once is exact.
    @pl.when(jnp.logical_and(i == 0, j == 0))
    def _():
        maxlat_ref[...] = jnp.zeros_like(maxlat_ref)

    tile_max = jnp.max(lat, axis=0, keepdims=True).reshape(1, 1, block_nf)
    maxlat_ref[:, pl.ds(j, 1), :] = jnp.maximum(maxlat_ref[:, pl.ds(j, 1), :], tile_max)


def _vmem_estimate_bytes(block_b, block_nf, d_in, ft, weight_buffers):
    bf16, f32 = 2, 4
    est = (
        weight_buffers * d_in * block_nf * bf16 * 2      # enc + dec tiles (multi-buffered)
        + 2 * block_b * d_in * bf16                      # x tile (double-buffered)
        + 2 * block_b * d_in * f32                       # recon output block
        + 2 * block_b * block_nf * bf16                  # latent output block
        + 2 * d_in * f32                                 # pre_b
        + 2 * ft * block_nf * f32                        # resident maxlat block
    )
    return est


def sae_forward(x, pre_b, enc, dec, *,
                block_b=512, block_nf=512, num_parallel=1,
                deep_weight_prefetch=False, vmem_limit_bytes=None):
    """SAE forward pass.

    block_b:       batch tile (>=256 recommended; the weight-reuse lever). Multiple of 8.
    block_nf:      feature tile (multiple of 256 for the v6e/v7x MXU; 128 ok on v5e).
    num_parallel:  1 on single-core v5e/v6e; 2 on v7x to shard across its TensorCores.
    deep_weight_prefetch: use 3-deep buffering on enc/dec tiles if a trace shows
                   exposed weight DMA (costs one extra weight-tile buffer each).
    """
    B, d_in = x.shape
    n_features = enc.shape[1]

    block_b = min(block_b, B)
    block_nf = min(block_nf, n_features)
    num_parallel = max(1, min(num_parallel, B // block_b))

    assert B % (block_b * num_parallel) == 0, "B must be divisible by block_b * num_parallel"
    assert n_features % block_nf == 0, "n_features must be divisible by block_nf"
    assert block_nf % 128 == 0 and block_b % 8 == 0

    bt = B // (block_b * num_parallel)    # batch tiles per parallel slice
    ft = n_features // block_nf           # feature tiles

    # Center and cast once in the wrapper (single fused XLA op); bf16 MXU operands,
    # f32 accumulation happens inside the kernel.
    pre_b_f32 = pre_b.reshape(1, d_in).astype(jnp.float32)
    x_bf = (x.astype(jnp.float32) - pre_b_f32).astype(jnp.bfloat16)
    enc_bf = enc.astype(jnp.bfloat16)
    dec_bf = dec.astype(jnp.bfloat16)

    weight_buffers = 3 if deep_weight_prefetch else 2
    if vmem_limit_bytes is None:
        # Explicit budget (important on v7x: 64 MiB/TC). Headroom for Mosaic internals.
        est = _vmem_estimate_bytes(block_b, block_nf, d_in, ft, weight_buffers)
        vmem_limit_bytes = max(32 << 20, est + (8 << 20))

    weight_mode = pl.Buffered(3) if deep_weight_prefetch else None

    recon, latent, maxlat = pl.pallas_call(
        _sae_kernel,
        out_shape=(
            jax.ShapeDtypeStruct((B, d_in), jnp.float32),                    # reconstruction
            jax.ShapeDtypeStruct((B, n_features), jnp.bfloat16),             # latent (bf16 writeback)
            jax.ShapeDtypeStruct((num_parallel, ft, block_nf), jnp.float32), # per-slice feature max
        ),
        grid_spec=pltpu.PrefetchScalarGridSpec(
            num_scalar_prefetch=0,
            grid=(num_parallel, bt, ft),
            in_specs=[
                pl.BlockSpec((block_b, d_in), lambda p, i, j: (p * bt + i, 0)),   # centered x tile
                pl.BlockSpec((1, d_in), lambda p, i, j: (0, 0)),                  # pre_b
                pl.BlockSpec((d_in, block_nf), lambda p, i, j: (0, j),
                             pipeline_mode=weight_mode),                          # enc tile
                pl.BlockSpec((block_nf, d_in), lambda p, i, j: (j, 0),
                             pipeline_mode=weight_mode),                          # dec tile
            ],
            out_specs=[
                pl.BlockSpec((block_b, d_in), lambda p, i, j: (p * bt + i, 0)),       # recon (resident over j)
                pl.BlockSpec((block_b, block_nf), lambda p, i, j: (p * bt + i, j)),   # latent tile
                pl.BlockSpec((1, ft, block_nf), lambda p, i, j: (p, 0, 0)),           # resident max acc
            ],
        ),
        compiler_params=pltpu.CompilerParams(
            # leading axis -> megacore sharding on v7x (per-slice max rows / recon blocks,
            # no cross-core race); batch + feature axes carry resident outputs -> arbitrary.
            dimension_semantics=("parallel", "arbitrary", "arbitrary"),
            vmem_limit_bytes=vmem_limit_bytes,
        ),
    )(x_bf, pre_b_f32, enc_bf, dec_bf)

    max_per_feature = jnp.max(maxlat.reshape(num_parallel, n_features), axis=0)
    active_latents = max_per_feature > 0.001   # glue: cheap compare outside kernel

    # TODO(synk): if the SAE is guaranteed weight-tied (dec == enc.T), drop the dec input
    # and decode with a transposed contraction against enc to halve weight HBM traffic.
    return {
        "reconstruction": recon,
        "latent": latent,
        "experts_chosen": None,
        "expert_prop": None,
        "expert_weighting": None,
        "active_latents": active_latents,
    }


if __name__ == "__main__":
    # Small, MXU-aligned shapes that still exercise every tiling path:
    # 2 batch tiles, 2 feature tiles, single parallel slice (v5e/v6e-style default).
    B, d_in, n_features = 512, 256, 512
    block_b, block_nf, num_parallel = 256, 256, 1

    key = jax.random.PRNGKey(0)
    k_x, k_b, k_e = jax.random.split(key, 3)

    # Deterministic parameter init matching SAE.__init__ semantics:
    #   pre_b ~ N(0,1)*0.01 ; enc ~ N(0,1)/sqrt(2)/sqrt(d_in) ; dec = enc.T
    pre_b = jax.random.normal(k_b, (d_in,), dtype=jnp.float32) * 0.01
    enc = jax.random.normal(k_e, (d_in, n_features), dtype=jnp.float32) / (2.0 ** 0.5) / (d_in ** 0.5)
    dec = enc.T

    x = jax.random.normal(k_x, (B, d_in), dtype=jnp.float32)

    out = sae_forward(x, pre_b, enc, dec,
                      block_b=block_b, block_nf=block_nf, num_parallel=num_parallel)
    jax.block_until_ready(out["reconstruction"])
    jax.block_until_ready(out["latent"])
    jax.block_until_ready(out["active_latents"])

    # Verify against plain-JAX f32 reference (bf16 matmul operands + bf16 latent
    # writeback -> loose tolerance).
    ref_latent = jnp.maximum((x - pre_b) @ enc, 0.0)
    ref_recon = ref_latent @ dec + pre_b
    assert jnp.allclose(out["latent"].astype(jnp.float32), ref_latent, atol=5e-2, rtol=5e-2)
    assert jnp.allclose(out["reconstruction"], ref_recon, atol=5e-2, rtol=5e-2)
    # Activation decision should match the f32 reference (values are far from the
    # 0.001 threshold at these statistics, so bf16 rounding cannot flip it).
    assert bool(jnp.all(out["active_latents"] == (jnp.max(ref_latent, axis=0) > 0.001)))

    print("KERNEL_OK")
</pallas_src>

<mosaic_0001>
module attributes {stable_mosaic.version = 11 : i64} {
  func.func @_sae_kernel(%arg0: i32, %arg1: i32, %arg2: i32, %arg3: memref<256x256xbf16, #tpu.memory_space<vmem>>, %arg4: memref<1x256xf32, #tpu.memory_space<vmem>>, %arg5: memref<256x256xbf16, #tpu.memory_space<vmem>>, %arg6: memref<256x256xbf16, #tpu.memory_space<vmem>>, %arg7: memref<256x256xf32, #tpu.memory_space<vmem>>, %arg8: memref<256x256xbf16, #tpu.memory_space<vmem>>, %arg9: memref<1x2x256xf32, #tpu.memory_space<vmem>>) attributes {dimension_semantics = [#tpu.dimension_semantics<parallel>, #tpu.dimension_semantics<arbitrary>, #tpu.dimension_semantics<arbitrary>], iteration_bounds = array<i64: 1, 2, 2>, scalar_prefetch = 0 : i64, scratch_operands = 0 : i64, tpu.core_type = #tpu.core_type<tc>, window_params = [{transform_indices = @transform_0, window_bounds = array<i64: 256, 256>}, {pipeline_mode = #tpu.pipeline_mode<synchronous>, transform_indices = @transform_1, window_bounds = array<i64: 1, 256>}, {transform_indices = @transform_2, window_bounds = array<i64: 256, 256>}, {transform_indices = @transform_3, window_bounds = array<i64: 256, 256>}, {transform_indices = @transform_4, window_bounds = array<i64: 256, 256>}, {transform_indices = @transform_5, window_bounds = array<i64: 256, 256>}, {transform_indices = @transform_6, window_bounds = array<i64: 1, 2, 256>}]} {
    %c0 = arith.constant 0 : index
    %c0_0 = arith.constant 0 : index
    %0 = vector.load %arg3[%c0, %c0_0] : memref<256x256xbf16, #tpu.memory_space<vmem>>, vector<256x256xbf16>
    %c0_1 = arith.constant 0 : index
    %c0_2 = arith.constant 0 : index
    %1 = vector.load %arg5[%c0_1, %c0_2] : memref<256x256xbf16, #tpu.memory_space<vmem>>, vector<256x256xbf16>
    %cst = arith.constant dense<0.000000e+00> : vector<256x256xf32>
    %2 = tpu.matmul %0, %1, %cst {dimension_numbers = #tpu.dot_dimension_numbers<[1], [0], [0], [1], [0, 0, 1, 1], [], []>} : vector<256x256xbf16>, vector<256x256xbf16>, vector<256x256xf32> -> vector<256x256xf32>
    %cst_3 = arith.constant 0.000000e+00 : f32
    %3 = vector.broadcast %cst_3 : f32 to vector<256x256xf32>
    %4 = arith.maximumf %2, %3 : vector<256x256xf32>
    %5 = arith.truncf %4 : vector<256x256xf32> to vector<256x256xbf16>
    %c0_4 = arith.constant 0 : index
    %c0_5 = arith.constant 0 : index
    %6 = vector.load %arg8[%c0_4, %c0_5] : memref<256x256xbf16, #tpu.memory_space<vmem>>, vector<256x256xbf16>
    tpu.vector_store %arg8[%c0_4, %c0_5], %5 {strides = array<i32>} : memref<256x256xbf16, #tpu.memory_space<vmem>>, vector<256x256xbf16>,
    %c0_i32 = arith.constant 0 : i32
    %7 = arith.cmpi eq, %arg2, %c0_i32 : i32
    %8 = arith.extui %7 : i1 to i32
    %c0_i32_6 = arith.constant 0 : i32
    %9 = arith.cmpi ne, %8, %c0_i32_6 : i32
    scf.if %9 {
      %c0_22 = arith.constant 0 : index
      %c0_23 = arith.constant 0 : index
      %29 = vector.load %arg4[%c0_22, %c0_23] : memref<1x256xf32, #tpu.memory_space<vmem>>, vector<1x256xf32>
      %30 = vector.shape_cast %29 : vector<1x256xf32> to vector<1x256xf32>
      %31 = vector.broadcast %30 : vector<1x256xf32> to vector<256x256xf32>
      %c0_24 = arith.constant 0 : index
      %c0_25 = arith.constant 0 : index
      %32 = vector.load %arg7[%c0_24, %c0_25] : memref<256x256xf32, #tpu.memory_space<vmem>>, vector<256x256xf32>
      tpu.vector_store %arg7[%c0_24, %c0_25], %31 {strides = array<i32>} : memref<256x256xf32, #tpu.memory_space<vmem>>, vector<256x256xf32>,
    } else {
    }
    %c0_7 = arith.constant 0 : index
    %c0_8 = arith.constant 0 : index
    %10 = vector.load %arg7[%c0_7, %c0_8] : memref<256x256xf32, #tpu.memory_space<vmem>>, vector<256x256xf32>
    %11 = arith.truncf %4 : vector<256x256xf32> to vector<256x256xbf16>
    %c0_9 = arith.constant 0 : index
    %c0_10 = arith.constant 0 : index
    %12 = vector.load %arg6[%c0_9, %c0_10] : memref<256x256xbf16, #tpu.memory_space<vmem>>, vector<256x256xbf16>
    %cst_11 = arith.constant dense<0.000000e+00> : vector<256x256xf32>
    %13 = tpu.matmul %11, %12, %cst_11 {dimension_numbers = #tpu.dot_dimension_numbers<[1], [0], [0], [1], [0, 0, 1, 1], [], []>} : vector<256x256xbf16>, vector<256x256xbf16>, vector<256x256xf32> -> vector<256x256xf32>
    %14 = arith.addf %10, %13 : vector<256x256xf32>
    %c0_12 = arith.constant 0 : index
    %c0_13 = arith.constant 0 : index
    %15 = vector.load %arg7[%c0_12, %c0_13] : memref<256x256xf32, #tpu.memory_space<vmem>>, vector<256x256xf32>
    tpu.vector_store %arg7[%c0_12, %c0_13], %14 {strides = array<i32>} : memref<256x256xf32, #tpu.memory_space<vmem>>, vector<256x256xf32>,
    %c0_i32_14 = arith.constant 0 : i32
    %16 = arith.cmpi eq, %arg1, %c0_i32_14 : i32
    %c0_i32_15 = arith.constant 0 : i32
    %17 = arith.cmpi eq, %arg2, %c0_i32_15 : i32
    %18 = arith.andi %16, %17 : i1
    %19 = arith.extui %18 : i1 to i32
    %c0_i32_16 = arith.constant 0 : i32
    %20 = arith.cmpi ne, %19, %c0_i32_16 : i32
    scf.if %20 {
      %cst_22 = arith.constant 0.000000e+00 : f32
      %29 = vector.broadcast %cst_22 : f32 to vector<1x2x256xf32>
      %c0_23 = arith.constant 0 : index
      %c0_24 = arith.constant 0 : index
      %c0_25 = arith.constant 0 : index
      %30 = vector.load %arg9[%c0_23, %c0_24, %c0_25] : memref<1x2x256xf32, #tpu.memory_space<vmem>>, vector<1x2x256xf32>
      tpu.vector_store %arg9[%c0_23, %c0_24, %c0_25], %29 {strides = array<i32>} : memref<1x2x256xf32, #tpu.memory_space<vmem>>, vector<1x2x256xf32>,
    } else {
    }
    %cst_17 = arith.constant dense<0xFF800000> : vector<256xf32>
    %21 = vector.multi_reduction <maximumf>, %4, %cst_17 [0] : vector<256x256xf32> to vector<256xf32>
    %22 = vector.shape_cast %21 : vector<256xf32> to vector<1x256xf32>
    %23 = vector.shape_cast %22 : vector<1x256xf32> to vector<1x1x256xf32>
    %c0_18 = arith.constant 0 : index
    %24 = arith.index_cast %arg2 : i32 to index
    %c0_19 = arith.constant 0 : index
    %25 = vector.load %arg9[%c0_18, %24, %c0_19] : memref<1x2x256xf32, #tpu.memory_space<vmem>>, vector<1x1x256xf32>
    %26 = arith.maximumf %25, %23 : vector<1x1x256xf32>
    %c0_20 = arith.constant 0 : index
    %27 = arith.index_cast %arg2 : i32 to index
    %c0_21 = arith.constant 0 : index
    %28 = vector.load %arg9[%c0_20, %27, %c0_21] : memref<1x2x256xf32, #tpu.memory_space<vmem>>, vector<1x1x256xf32>
    tpu.vector_store %arg9[%c0_20, %27, %c0_21], %26 {strides = array<i32>} : memref<1x2x256xf32, #tpu.memory_space<vmem>>, vector<1x1x256xf32>,
    return
  }
  func.func @transform_0(%arg0: i32, %arg1: i32, %arg2: i32) -> (i32, i32) {
    %c2_i32 = arith.constant 2 : i32
    %0 = arith.muli %arg0, %c2_i32 : i32
    %1 = arith.addi %0, %arg1 : i32
    %c0_i32 = arith.constant 0 : i32
    %c0_i32_0 = arith.constant 0 : i32
    return %1, %c0_i32 : i32, i32
  }
  func.func @transform_1(%arg0: i32, %arg1: i32, %arg2: i32) -> (i32, i32) {
    %c0_i32 = arith.constant 0 : i32
    %c0_i32_0 = arith.constant 0 : i32
    %c0_i32_1 = arith.constant 0 : i32
    return %c0_i32, %c0_i32_0 : i32, i32
  }
  func.func @transform_2(%arg0: i32, %arg1: i32, %arg2: i32) -> (i32, i32) {
    %c0_i32 = arith.constant 0 : i32
    %c0_i32_0 = arith.constant 0 : i32
    return %c0_i32, %arg2 : i32, i32
  }
  func.func @transform_3(%arg0: i32, %arg1: i32, %arg2: i32) -> (i32, i32) {
    %c0_i32 = arith.constant 0 : i32
    %c0_i32_0 = arith.constant 0 : i32
    return %arg2, %c0_i32 : i32, i32
  }
  func.func @transform_4(%arg0: i32, %arg1: i32, %arg2: i32) -> (i32, i32) {
    %c2_i32 = arith.constant 2 : i32
    %0 = arith.muli %arg0, %c2_i32 : i32
    %1 = arith.addi %0, %arg1 : i32
    %c0_i32 = arith.constant 0 : i32
    %c0_i32_0 = arith.constant 0 : i32
    return %1, %c0_i32 : i32, i32
  }
  func.func @transform_5(%arg0: i32, %arg1: i32, %arg2: i32) -> (i32, i32) {
    %c2_i32 = arith.constant 2 : i32
    %0 = arith.muli %arg0, %c2_i32 : i32
    %1 = arith.addi %0, %arg1 : i32
    %c0_i32 = arith.constant 0 : i32
    return %1, %arg2 : i32, i32
  }
  func.func @transform_6(%arg0: i32, %arg1: i32, %arg2: i32) -> (i32, i32, i32) {
    %c0_i32 = arith.constant 0 : i32
    %c0_i32_0 = arith.constant 0 : i32
    %c0_i32_1 = arith.constant 0 : i32
    return %arg0, %c0_i32, %c0_i32_0 : i32, i32, i32
  }
}

</mosaic_0001>

<llo_original>
// kernel: tpu_custom_call.1
$region0: #{tpu_custom_call.1}
  #allocation0 [shape = 'u32[]', space=smem, size = 0x4, offset = 0x4, fixed_abs, tag = 'smem constant byte address 0x4 - core index']
  #allocation1 [shape = 'u32[144,128]{1,0:T(1,128)}', space=vmem, size = 0x12000, scoped, tag = 'internal scratch']
  %s0 = inlined_call_operand.hbm [shape: bf16[512,256], index: 0, kind: input, shape index: {}]
  %s1 = inlined_call_operand.hbm [shape: f32[1,256], index: 1, kind: input, shape index: {}]
  %s2 = inlined_call_operand.hbm [shape: bf16[256,512], index: 2, kind: input, shape index: {}]
  %s3 = inlined_call_operand.hbm [shape: bf16[512,256], index: 3, kind: input, shape index: {}]
  %s4 = inlined_call_operand.hbm [shape: f32[512,256], index: 4, kind: output, shape index: {0}]
  %s5 = inlined_call_operand.hbm [shape: bf16[512,512], index: 5, kind: output, shape index: {1}]
  %s6 = inlined_call_operand.hbm [shape: f32[1,2,256], index: 6, kind: output, shape index: {2}]
  %7 = xla_tuple %s4, %s5, %s6
  %s8 = sld [smem:[#allocation0]]
  $region89: #{tpu_custom_call.1} parent=0
    _
  %s10 = ssub.s32 1, %s8
  %s11 = scalar_select 0, %s10, %s8
  $region1: #{tpu_custom_call.1} parent=0
    #allocation2 [shape = 'u8[262144]{0}', space=vmem, size = 0x40000, scoped, tag = 'input window, operand 0']
    #allocation3 [shape = 's32[2]{0}', space=sflag, size = 0x8, scoped, tag = 'scoped memory for tpu_custom_call.1']
    #allocation4 [shape = 's32[2]{0}', space=sflag, size = 0x8, scoped, tag = 'scoped memory for tpu_custom_call.1']
    #allocation5 [shape = 'u8[1024]{0}', space=vmem, size = 0x400, scoped, tag = 'input window, operand 1, single buffered']
    #allocation6 [shape = 's32[1]{0}', space=sflag, size = 0x4, scoped, tag = 'scoped memory for tpu_custom_call.1']
    #allocation7 [shape = 'u8[262144]{0}', space=vmem, size = 0x40000, scoped, tag = 'input window, operand 2']
    #allocation8 [shape = 'u8[262144]{0}', space=vmem, size = 0x40000, scoped, tag = 'input window, operand 3']
    #allocation9 [shape = 'u8[524288]{0}', space=vmem, size = 0x80000, scoped, tag = 'output window, operand 0']
    #allocation10 [shape = 'u8[262144]{0}', space=vmem, size = 0x40000, scoped, tag = 'output window, operand 1']
    #allocation11 [shape = 's32[2]{0}', space=sflag, size = 0x8, scoped, tag = 'scoped memory for tpu_custom_call.1']
    #allocation12 [shape = 'u8[2048]{0}', space=vmem, size = 0x800, scoped, tag = 'output window, operand 2, single buffered']
    %12 = vsyncpa [#allocation3], 0
    %s13 = scalar_lea.sflag [#allocation3], 1
    %14 = vsyncpa %s13, 0
    %15 = vsyncpa [#allocation6], 0
    %16 = vsyncpa [#allocation4], 0
    %s17 = scalar_lea.sflag [#allocation4], 1
    %18 = vsyncpa %s17, 0
    %19 = vsyncpa [#allocation11], 0
    %s20 = scalar_lea.sflag [#allocation11], 1
    %21 = vsyncpa %s20, 0
    loop: start=0, step=1, limit=6
    $region2: #{tpu_custom_call.1} parent=1 // loop_pre_header
      _
    $region3: #{tpu_custom_call.1} parent=1 // loop_header
      %s23 = sphi 0, %s27
      %p24 = scmp.ge.s32.totalorder %s23, 6
      %s30 = sphi 0, %s49
      %s31 = sphi 0, %s45
      %s32 = sphi 0, %s41
      %s33 = sphi 0, %s30
      %s34 = sphi 0, %s31
      %s35 = sphi 0, %s32
      %s36 = sphi 0, %s33
      %s37 = sphi 0, %s34
      %s38 = sphi 0, %s35
      %s56 = sphi 0, %s58
      %s59 = sphi 0, %s56
      %s60 = sphi 0, %s59
      %s76 = sphi 0, %s60
      %s80 = sphi 0, %s80
      %s82 = sphi 0, %s80
      %s83 = sphi 0, %s82
      %s97 = sphi 0, %s83
      %s103 = sphi 0, %s105
      %s106 = sphi 0, %s103
      %s107 = sphi 0, %s106
      %s123 = sphi 0, %s107
      %s129 = sphi 0, %s131
      %s132 = sphi 0, %s129
      %s133 = sphi 0, %s132
      %s149 = sphi 0, %s133
      %s159 = sphi 0, %s161
      %s162 = sphi 0, %s159
      %s163 = sphi 0, %s162
      %s179 = sphi 0, %s163
      %s191 = sphi 0, %s193
      %s194 = sphi 0, %s191
      %s195 = sphi 0, %s194
      %s211 = sphi 0, %s195
      %s217 = sphi 0, %s219
      %s220 = sphi 0, %s217
      %s221 = sphi 0, %s220
      %s237 = sphi 0, %s221
    $region4: #{tpu_custom_call.1} parent=1 // loop_header_branch
      %26 = sbr.rel (%p24) target = $region8
    $region5: #{tpu_custom_call.1} parent=1 // loop_body
      %s28 = ssub.s32 %s23, 1
      %s29 = ssub.s32 %s23, 2
      %s39 = sadd.s32 1, %s32
      %p40 = scmp.ge.s32.totalorder %s39, 2
      %s41 = scalar_select %p40, 0, %s39
      %s42 = sadd.s32 1, %s31
      %s43 = scalar_select %p40, %s42, %s31
      %p44 = scmp.ge.s32.totalorder %s43, 2
      %s45 = scalar_select %p44, 0, %s43
      %s46 = sadd.s32 1, %s30
      %s47 = scalar_select %p44, %s46, %s30
      %p48 = scmp.ge.s32.totalorder %s47, 1
      %s49 = scalar_select %p48, 0, %s47
      %s50 = smul.u32 %s30, 2
      %s51 = sadd.s32 %s50, %s31
      %s52 = smul.u32 %s49, 2
      %s53 = sadd.s32 %s52, %s45
      %s54 = ssub.s32 %s51, %s53
      %p55 = scmp.eq.s32.totalorder %s54, 0
      %s57 = sadd.s32 %s56, 1
      %s58 = scalar_select %p55, %s56, %s57
      %p61 = pneg %p55
      %p62 = scmp.eq.s32.totalorder %s23, 3
      %p63 = por %p61, %p62
      %p64 = scmp.ne.s32.totalorder %s56, %s59
      %p65 = scmp.eq.s32.totalorder %s23, 0
      %p66 = por %p64, %p65
      %p67 = scmp.ne.s32.totalorder %s56, %s59
      %p68 = scmp.eq.s32.totalorder %s28, 3
      %p69 = por %p67, %p68
      %p70 = scmp.ne.s32.totalorder %s59, %s60
      %p71 = scmp.eq.s32.totalorder %s28, 0
      %p72 = por %p70, %p71
      %p73 = scmp.ne.s32.totalorder %s59, %s60
      %p74 = scmp.eq.s32.totalorder %s29, 3
      %p75 = por %p73, %p74
      %p77 = scmp.ne.s32.totalorder %s60, %s76
      %p78 = scmp.eq.s32.totalorder %s29, 0
      %p79 = por %p77, %p78
      %s81 = sadd.s32 %s80, 1
      %p84 = scmp.eq.s32.totalorder %s23, 3
      %p85 = scmp.ne.s32.totalorder %s80, %s82
      %p86 = scmp.eq.s32.totalorder %s23, 0
      %p87 = por %p85, %p86
      %p88 = scmp.ne.s32.totalorder %s80, %s82
      %p89 = scmp.eq.s32.totalorder %s28, 3
      %p90 = por %p88, %p89
      %p91 = scmp.ne.s32.totalorder %s82, %s83
      %p92 = scmp.eq.s32.totalorder %s28, 0
      %p93 = por %p91, %p92
      %p94 = scmp.ne.s32.totalorder %s82, %s83
      %p95 = scmp.eq.s32.totalorder %s29, 3
      %p96 = por %p94, %p95
      %p98 = scmp.ne.s32.totalorder %s83, %s97
      %p99 = scmp.eq.s32.totalorder %s29, 0
      %p100 = por %p98, %p99
      %s101 = ssub.s32 %s32, %s41
      %p102 = scmp.eq.s32.totalorder %s101, 0
      %s104 = sadd.s32 %s103, 1
      %s105 = scalar_select %p102, %s103, %s104
      %p108 = pneg %p102
      %p109 = scmp.eq.s32.totalorder %s23, 3
      %p110 = por %p108, %p109
      %p111 = scmp.ne.s32.totalorder %s103, %s106
      %p112 = scmp.eq.s32.totalorder %s23, 0
      %p113 = por %p111, %p112
      %p114 = scmp.ne.s32.totalorder %s103, %s106
      %p115 = scmp.eq.s32.totalorder %s28, 3
      %p116 = por %p114, %p115
      %p117 = scmp.ne.s32.totalorder %s106, %s107
      %p118 = scmp.eq.s32.totalorder %s28, 0
      %p119 = por %p117, %p118
      %p120 = scmp.ne.s32.totalorder %s106, %s107
      %p121 = scmp.eq.s32.totalorder %s29, 3
      %p122 = por %p120, %p121
      %p124 = scmp.ne.s32.totalorder %s107, %s123
      %p125 = scmp.eq.s32.totalorder %s29, 0
      %p126 = por %p124, %p125
      %s127 = ssub.s32 %s32, %s41
      %p128 = scmp.eq.s32.totalorder %s127, 0
      %s130 = sadd.s32 %s129, 1
      %s131 = scalar_select %p128, %s129, %s130
      %p134 = pneg %p128
      %p135 = scmp.eq.s32.totalorder %s23, 3
      %p136 = por %p134, %p135
      %p137 = scmp.ne.s32.totalorder %s129, %s132
      %p138 = scmp.eq.s32.totalorder %s23, 0
      %p139 = por %p137, %p138
      %p140 = scmp.ne.s32.totalorder %s129, %s132
      %p141 = scmp.eq.s32.totalorder %s28, 3
      %p142 = por %p140, %p141
      %p143 = scmp.ne.s32.totalorder %s132, %s133
      %p144 = scmp.eq.s32.totalorder %s28, 0
      %p145 = por %p143, %p144
      %p146 = scmp.ne.s32.totalorder %s132, %s133
      %p147 = scmp.eq.s32.totalorder %s29, 3
      %p148 = por %p146, %p147
      %p150 = scmp.ne.s32.totalorder %s133, %s149
      %p151 = scmp.eq.s32.totalorder %s29, 0
      %p152 = por %p150, %p151
      %s153 = smul.u32 %s30, 2
      %s154 = sadd.s32 %s153, %s31
      %s155 = smul.u32 %s49, 2
      %s156 = sadd.s32 %s155, %s45
      %s157 = ssub.s32 %s154, %s156
      %p158 = scmp.eq.s32.totalorder %s157, 0
      %s160 = sadd.s32 %s159, 1
      %s161 = scalar_select %p158, %s159, %s160
      %p164 = pneg %p158
      %p165 = scmp.eq.s32.totalorder %s23, 3
      %p166 = por %p164, %p165
      %p167 = scmp.ne.s32.totalorder %s159, %s162
      %p168 = scmp.eq.s32.totalorder %s23, 0
      %p169 = por %p167, %p168
      %p170 = scmp.ne.s32.totalorder %s159, %s162
      %p171 = scmp.eq.s32.totalorder %s28, 3
      %p172 = por %p170, %p171
      %p173 = scmp.ne.s32.totalorder %s162, %s163
      %p174 = scmp.eq.s32.totalorder %s28, 0
      %p175 = por %p173, %p174
      %p176 = scmp.ne.s32.totalorder %s162, %s163
      %p177 = scmp.eq.s32.totalorder %s29, 3
      %p178 = por %p176, %p177
      %p180 = scmp.ne.s32.totalorder %s163, %s179
      %p181 = scmp.eq.s32.totalorder %s29, 0
      %p182 = por %p180, %p181
      %s183 = smul.u32 %s30, 2
      %s184 = sadd.s32 %s183, %s31
      %s185 = smul.u32 %s49, 2
      %s186 = sadd.s32 %s185, %s45
      %s187 = ssub.s32 %s184, %s186
      %s188 = ssub.s32 %s32, %s41
      %s189 = sor.u32 %s187, %s188
      %p190 = scmp.eq.s32.totalorder %s189, 0
      %s192 = sadd.s32 %s191, 1
      %s193 = scalar_select %p190, %s191, %s192
      %p196 = pneg %p190
      %p197 = scmp.eq.s32.totalorder %s23, 3
      %p198 = por %p196, %p197
      %p199 = scmp.ne.s32.totalorder %s191, %s194
      %p200 = scmp.eq.s32.totalorder %s23, 0
      %p201 = por %p199, %p200
      %p202 = scmp.ne.s32.totalorder %s191, %s194
      %p203 = scmp.eq.s32.totalorder %s28, 3
      %p204 = por %p202, %p203
      %p205 = scmp.ne.s32.totalorder %s194, %s195
      %p206 = scmp.eq.s32.totalorder %s28, 0
      %p207 = por %p205, %p206
      %p208 = scmp.ne.s32.totalorder %s194, %s195
      %p209 = scmp.eq.s32.totalorder %s29, 3
      %p210 = por %p208, %p209
      %p212 = scmp.ne.s32.totalorder %s195, %s211
      %p213 = scmp.eq.s32.totalorder %s29, 0
      %p214 = por %p212, %p213
      %s215 = ssub.s32 %s30, %s49
      %p216 = scmp.eq.s32.totalorder %s215, 0
      %s218 = sadd.s32 %s217, 1
      %s219 = scalar_select %p216, %s217, %s218
      %p222 = pneg %p216
      %p223 = scmp.eq.s32.totalorder %s23, 3
      %p224 = por %p222, %p223
      %p225 = scmp.ne.s32.totalorder %s217, %s220
      %p226 = scmp.eq.s32.totalorder %s23, 0
      %p227 = por %p225, %p226
      %p228 = scmp.ne.s32.totalorder %s217, %s220
      %p229 = scmp.eq.s32.totalorder %s28, 3
      %p230 = por %p228, %p229
      %p231 = scmp.ne.s32.totalorder %s220, %s221
      %p232 = scmp.eq.s32.totalorder %s28, 0
      %p233 = por %p231, %p232
      %p234 = scmp.ne.s32.totalorder %s220, %s221
      %p235 = scmp.eq.s32.totalorder %s29, 3
      %p236 = por %p234, %p235
      %p238 = scmp.ne.s32.totalorder %s221, %s237
      %p239 = scmp.eq.s32.totalorder %s29, 0
      %p240 = por %p238, %p239
      %p241 = scmp.le.s32.totalorder 1, %s23
      %p242 = scmp.lt.s32.totalorder %s23, 5
      %p243 = pnand %p241, %p242
      %p244 = pneg %p243
      // Predicated region
      $region9: #{tpu_custom_call.1} parent=5 // pred_check
        _
      $region10: #{tpu_custom_call.1} parent=5 // pred_check_branch
        %246 = sbr.rel (%p243) target = $region12
      $region11: #{tpu_custom_call.1} parent=5 // pred_region
        %s247 = ssub.s32 %s23, 1
        // Predicated region
        $region13: #{tpu_custom_call.1} parent=11 // pred_check
          %p248 = pneg %p93
        $region14: #{tpu_custom_call.1} parent=11 // pred_check_branch
          %250 = sbr.rel (%p248) target = $region16
        $region15: #{tpu_custom_call.1} parent=11 // pred_region
          %s252 = ssub.s32 32, 32
          %253 = vsyncadd [#allocation6], %s252
          %s255 = sshll.u32 [#allocation5], 4
          %s256 = int_to_ptr.vmem [resolvable:$true] %s255
          %258 = dma.hbm_to_vmem [thread:$0]  %s1, 32, %s256, [#allocation6]
        $region16: #{tpu_custom_call.1} parent=11 // pred_fallthru
          _
      $region12: #{tpu_custom_call.1} parent=5 // pred_fallthru
        _
      %p259 = scmp.lt.s32.totalorder %s23, 4
      // Predicated region
      $region17: #{tpu_custom_call.1} parent=5 // pred_check
        %p260 = pneg %p259
      $region18: #{tpu_custom_call.1} parent=5 // pred_check_branch
        %262 = sbr.rel (%p260) target = $region20
      $region19: #{tpu_custom_call.1} parent=5 // pred_region
        // Predicated region
        $region21: #{tpu_custom_call.1} parent=19 // pred_check
          %p263 = pneg %p66
        $region22: #{tpu_custom_call.1} parent=19 // pred_check_branch
          %265 = sbr.rel (%p263) target = $region24
        $region23: #{tpu_custom_call.1} parent=19 // pred_region
          %s266 = sand.u32 %s23, 1
          %s267 = scalar_lea.sflag [#allocation3], %s266
          %s268 = sand.u32 %s56, 1
          %s269 = smul.addr %s268, 256
          %s270 = scalar_lea.vmem [#allocation2], %s269
          %s271 = smul.u32 %s30, 2
          %s272 = sadd.s32 %s271, %s31
          %s273 = smul.u32 32, %s272
          %s275 = ssub.s32 4096, 4096
          %276 = vsyncadd %s267, %s275
          %s277 = smul.addr %s273, 2
          %s278 = smul.addr %s277, 64
          %s279 = scalar_lea.hbm %s0, %s278
          %s280 = sshll.u32 %s270, 4
          %s281 = int_to_ptr.vmem [resolvable:$true] %s280
          %286 = dma.hbm_to_vmem [thread:$0]  %s279, 4096, %s281, %s267, 128, 128, 8
        $region24: #{tpu_custom_call.1} parent=19 // pred_fallthru
          _
        // Predicated region
        $region25: #{tpu_custom_call.1} parent=19 // pred_check
          %p287 = pneg %p113
        $region26: #{tpu_custom_call.1} parent=19 // pred_check_branch
          %289 = sbr.rel (%p287) target = $region28
        $region27: #{tpu_custom_call.1} parent=19 // pred_region
          %s290 = sand.u32 %s23, 1
          %s291 = scalar_lea.sflag [#allocation3], %s290
          %s292 = sand.u32 %s103, 1
          %s293 = smul.addr %s292, 256
          %s294 = scalar_lea.vmem [#allocation7], %s293
          %s295 = smul.u32 2, %s32
          %s297 = ssub.s32 4096, 4096
          %298 = vsyncadd %s291, %s297
          %s299 = smul.addr %s295, 64
          %s300 = scalar_lea.hbm %s2, %s299
          %s301 = sshll.u32 %s294, 4
          %s302 = int_to_ptr.vmem [resolvable:$true] %s301
          %307 = dma.hbm_to_vmem [thread:$0]  %s300, 4096, %s302, %s291, 256, 128, 8
        $region28: #{tpu_custom_call.1} parent=19 // pred_fallthru
          _
        // Predicated region
        $region29: #{tpu_custom_call.1} parent=19 // pred_check
          %p308 = pneg %p139
        $region30: #{tpu_custom_call.1} parent=19 // pred_check_branch
          %310 = sbr.rel (%p308) target = $region32
        $region31: #{tpu_custom_call.1} parent=19 // pred_region
          %s311 = sand.u32 %s23, 1
          %s312 = scalar_lea.sflag [#allocation3], %s311
          %s313 = sand.u32 %s129, 1
          %s314 = smul.addr %s313, 256
          %s315 = scalar_lea.vmem [#allocation8], %s314
          %s316 = smul.u32 32, %s32
          %s318 = ssub.s32 4096, 4096
          %319 = vsyncadd %s312, %s318
          %s320 = smul.addr %s316, 2
          %s321 = smul.addr %s320, 64
          %s322 = scalar_lea.hbm %s3, %s321
          %s323 = sshll.u32 %s315, 4
          %s324 = int_to_ptr.vmem [resolvable:$true] %s323
          %329 = dma.hbm_to_vmem [thread:$0]  %s322, 4096, %s324, %s312, 128, 128, 8
        $region32: #{tpu_custom_call.1} parent=19 // pred_fallthru
          _
      $region20: #{tpu_custom_call.1} parent=5 // pred_fallthru
        _
      %p330 = scmp.le.s32.totalorder 1, %s23
      %p331 = scmp.lt.s32.totalorder %s23, 5
      %p332 = pnand %p330, %p331
      %p333 = pneg %p332
      // Predicated region
      $region33: #{tpu_custom_call.1} parent=5 // pred_check
        _
      $region34: #{tpu_custom_call.1} parent=5 // pred_check_branch
        %335 = sbr.rel (%p332) target = $region36
      $region35: #{tpu_custom_call.1} parent=5 // pred_region
        %s336 = ssub.s32 %s23, 1
        %s337 = sand.u32 %s28, 1
        %s338 = scalar_lea.sflag [#allocation3], %s337
        %s339 = sand.u32 %s59, 1
        %s340 = smul.addr %s339, 256
        %s341 = scalar_lea.vmem [#allocation2], %s340
        // Predicated region
        $region37: #{tpu_custom_call.1} parent=35 // pred_check
          %p342 = pneg %p72
        $region38: #{tpu_custom_call.1} parent=35 // pred_check_branch
          %344 = sbr.rel (%p342) target = $region40
        $region39: #{tpu_custom_call.1} parent=35 // pred_region
          %345 = dma.done %s338, 4096
        $region40: #{tpu_custom_call.1} parent=35 // pred_fallthru
          _
        // Predicated region
        $region41: #{tpu_custom_call.1} parent=35 // pred_check
          %p346 = pneg %p93
        $region42: #{tpu_custom_call.1} parent=35 // pred_check_branch
          %348 = sbr.rel (%p346) target = $region44
        $region43: #{tpu_custom_call.1} parent=35 // pred_region
          %349 = dma.done [#allocation6], 32
        $region44: #{tpu_custom_call.1} parent=35 // pred_fallthru
          _
        %s350 = sand.u32 %s28, 1
        %s351 = scalar_lea.sflag [#allocation3], %s350
        %s352 = sand.u32 %s106, 1
        %s353 = smul.addr %s352, 256
        %s354 = scalar_lea.vmem [#allocation7], %s353
        // Predicated region
        $region45: #{tpu_custom_call.1} parent=35 // pred_check
          %p355 = pneg %p119
        $region46: #{tpu_custom_call.1} parent=35 // pred_check_branch
          %357 = sbr.rel (%p355) target = $region48
        $region47: #{tpu_custom_call.1} parent=35 // pred_region
          %358 = dma.done %s351, 4096
        $region48: #{tpu_custom_call.1} parent=35 // pred_fallthru
          _
        %s359 = sand.u32 %s28, 1
        %s360 = scalar_lea.sflag [#allocation3], %s359
        %s361 = sand.u32 %s132, 1
        %s362 = smul.addr %s361, 256
        %s363 = scalar_lea.vmem [#allocation8], %s362
        // Predicated region
        $region49: #{tpu_custom_call.1} parent=35 // pred_check
          %p364 = pneg %p145
        $region50: #{tpu_custom_call.1} parent=35 // pred_check_branch
          %366 = sbr.rel (%p364) target = $region52
        $region51: #{tpu_custom_call.1} parent=35 // pred_region
          %367 = dma.done %s360, 4096
        $region52: #{tpu_custom_call.1} parent=35 // pred_fallthru
          _
        %s368 = sand.u32 %s28, 1
        %s369 = scalar_lea.sflag [#allocation3], %s368
        %s370 = sand.u32 %s59, 1
        %s371 = smul.addr %s370, 256
        %s372 = scalar_lea.vmem [#allocation2], %s371
        %p373 = pneg %p72
        %p374 = pneg %p69
        %p375 = pneg %p93
        %p376 = pneg %p90
        %s377 = sand.u32 %s28, 1
        %s378 = scalar_lea.sflag [#allocation3], %s377
        %s379 = sand.u32 %s106, 1
        %s380 = smul.addr %s379, 256
        %s381 = scalar_lea.vmem [#allocation7], %s380
        %p382 = pneg %p119
        %p383 = pneg %p116
        %s384 = sand.u32 %s28, 1
        %s385 = scalar_lea.sflag [#allocation3], %s384
        %s386 = sand.u32 %s132, 1
        %s387 = smul.addr %s386, 256
        %s388 = scalar_lea.vmem [#allocation8], %s387
        %p389 = pneg %p145
        %p390 = pneg %p142
        %p391 = pneg %p175
        %p392 = pneg %p172
        %s393 = sand.u32 %s162, 1
        %s394 = scalar_lea.sflag [#allocation4], %s393
        %s395 = sand.u32 %s162, 1
        %s396 = smul.addr %s395, 512
        %s397 = scalar_lea.vmem [#allocation9], %s396
        %p398 = pneg %p207
        %p399 = pneg %p204
        %s400 = sand.u32 %s28, 1
        %s401 = scalar_lea.sflag [#allocation11], %s400
        %s402 = sand.u32 %s194, 1
        %s403 = smul.addr %s402, 256
        %s404 = scalar_lea.vmem [#allocation10], %s403
        %p405 = pneg %p233
        %p406 = pneg %p230
        %s407 = smul.u32 %s33, 2
        %s408 = sadd.s32 %s407, %s34
        %s409 = smul.u32 32, %s408
        %s410 = smul.u32 2, %s35
        %s411 = smul.u32 32, %s35
        %s412 = smul.u32 %s33, 2
        %s413 = sadd.s32 %s412, %s34
        %s414 = smul.u32 32, %s413
        %s415 = smul.u32 %s33, 2
        %s416 = sadd.s32 %s415, %s34
        %s417 = smul.u32 32, %s416
        %s418 = smul.u32 2, %s35
        %v419 = vld [vmem:[%s341] sm:$0xff]
        %v420 = vld [vmem:[%s341 + $0x8] sm:$0xff]
        %v421 = vld [vmem:[%s341 + $0x10] sm:$0xff]
        %v422 = vld [vmem:[%s341 + $0x18] sm:$0xff]
        %v423 = vld [vmem:[%s341 + $0x20] sm:$0xff]
        %v424 = vld [vmem:[%s341 + $0x28] sm:$0xff]
        %v425 = vld [vmem:[%s341 + $0x30] sm:$0xff]
        %v426 = vld [vmem:[%s341 + $0x38] sm:$0xff]
        %v427 = vld [vmem:[%s341 + $0x40] sm:$0xff]
        %v428 = vld [vmem:[%s341 + $0x48] sm:$0xff]
        %v429 = vld [vmem:[%s341 + $0x50] sm:$0xff]
        %v430 = vld [vmem:[%s341 + $0x58] sm:$0xff]
        %v431 = vld [vmem:[%s341 + $0x60] sm:$0xff]
        %v432 = vld [vmem:[%s341 + $0x68] sm:$0xff]
        %v433 = vld [vmem:[%s341 + $0x70] sm:$0xff]
        %v434 = vld [vmem:[%s341 + $0x78] sm:$0xff]
        %v435 = vld [vmem:[%s341 + $0x80] sm:$0xff]
        %v436 = vld [vmem:[%s341 + $0x88] sm:$0xff]
        %v437 = vld [vmem:[%s341 + $0x90] sm:$0xff]
        %v438 = vld [vmem:[%s341 + $0x98] sm:$0xff]
        %v439 = vld [vmem:[%s341 + $0xa0] sm:$0xff]
        %v440 = vld [vmem:[%s341 + $0xa8] sm:$0xff]
        %v441 = vld [vmem:[%s341 + $0xb0] sm:$0xff]
        %v442 = vld [vmem:[%s341 + $0xb8] sm:$0xff]
        %v443 = vld [vmem:[%s341 + $0xc0] sm:$0xff]
        %v444 = vld [vmem:[%s341 + $0xc8] sm:$0xff]
        %v445 = vld [vmem:[%s341 + $0xd0] sm:$0xff]
        %v446 = vld [vmem:[%s341 + $0xd8] sm:$0xff]
        %v447 = vld [vmem:[%s341 + $0xe0] sm:$0xff]
        %v448 = vld [vmem:[%s341 + $0xe8] sm:$0xff]
        %v449 = vld [vmem:[%s341 + $0xf0] sm:$0xff]
        %v450 = vld [vmem:[%s341 + $0xf8] sm:$0xff]
        %v451 = vld [vmem:[%s354] sm:$0xff]
        %v452 = vld [vmem:[%s354 + $0x8] sm:$0xff]
        %v453 = vld [vmem:[%s354 + $0x10] sm:$0xff]
        %v454 = vld [vmem:[%s354 + $0x18] sm:$0xff]
        %v455 = vld [vmem:[%s354 + $0x20] sm:$0xff]
        %v456 = vld [vmem:[%s354 + $0x28] sm:$0xff]
        %v457 = vld [vmem:[%s354 + $0x30] sm:$0xff]
        %v458 = vld [vmem:[%s354 + $0x38] sm:$0xff]
        %v459 = vld [vmem:[%s354 + $0x40] sm:$0xff]
        %v460 = vld [vmem:[%s354 + $0x48] sm:$0xff]
        %v461 = vld [vmem:[%s354 + $0x50] sm:$0xff]
        %v462 = vld [vmem:[%s354 + $0x58] sm:$0xff]
        %v463 = vld [vmem:[%s354 + $0x60] sm:$0xff]
        %v464 = vld [vmem:[%s354 + $0x68] sm:$0xff]
        %v465 = vld [vmem:[%s354 + $0x70] sm:$0xff]
        %v466 = vld [vmem:[%s354 + $0x78] sm:$0xff]
        %v467 = vld [vmem:[%s354 + $0x80] sm:$0xff]
        %v468 = vld [vmem:[%s354 + $0x88] sm:$0xff]
        %v469 = vld [vmem:[%s354 + $0x90] sm:$0xff]
        %v470 = vld [vmem:[%s354 + $0x98] sm:$0xff]
        %v471 = vld [vmem:[%s354 + $0xa0] sm:$0xff]
        %v472 = vld [vmem:[%s354 + $0xa8] sm:$0xff]
        %v473 = vld [vmem:[%s354 + $0xb0] sm:$0xff]
        %v474 = vld [vmem:[%s354 + $0xb8] sm:$0xff]
        %v475 = vld [vmem:[%s354 + $0xc0] sm:$0xff]
        %v476 = vld [vmem:[%s354 + $0xc8] sm:$0xff]
        %v477 = vld [vmem:[%s354 + $0xd0] sm:$0xff]
        %v478 = vld [vmem:[%s354 + $0xd8] sm:$0xff]
        %v479 = vld [vmem:[%s354 + $0xe0] sm:$0xff]
        %v480 = vld [vmem:[%s354 + $0xe8] sm:$0xff]
        %v481 = vld [vmem:[%s354 + $0xf0] sm:$0xff]
        %v482 = vld [vmem:[%s354 + $0xf8] sm:$0xff]
        %v515 = vunpack.c.l.b16 %v419
        %v516 = vunpack.c.h.b16 %v419
        %v517 = vunpack.c.l.b16 %v420
        %v518 = vunpack.c.h.b16 %v420
        %v519 = vunpack.c.l.b16 %v421
        %v520 = vunpack.c.h.b16 %v421
        %v521 = vunpack.c.l.b16 %v422
        %v522 = vunpack.c.h.b16 %v422
        %v523 = vunpack.c.l.b16 %v423
        %v524 = vunpack.c.h.b16 %v423
        %v525 = vunpack.c.l.b16 %v424
        %v526 = vunpack.c.h.b16 %v424
        %v527 = vunpack.c.l.b16 %v425
        %v528 = vunpack.c.h.b16 %v425
        %v529 = vunpack.c.l.b16 %v426
        %v530 = vunpack.c.h.b16 %v426
        %v531 = vunpack.c.l.b16 %v427
        %v532 = vunpack.c.h.b16 %v427
        %v533 = vunpack.c.l.b16 %v428
        %v534 = vunpack.c.h.b16 %v428
        %v535 = vunpack.c.l.b16 %v429
        %v536 = vunpack.c.h.b16 %v429
        %v537 = vunpack.c.l.b16 %v430
        %v538 = vunpack.c.h.b16 %v430
        %v539 = vunpack.c.l.b16 %v431
        %v540 = vunpack.c.h.b16 %v431
        %v541 = vunpack.c.l.b16 %v432
        %v542 = vunpack.c.h.b16 %v432
        %v543 = vunpack.c.l.b16 %v433
        %v544 = vunpack.c.h.b16 %v433
        %v545 = vunpack.c.l.b16 %v434
        %v546 = vunpack.c.h.b16 %v434
        %v547 = vunpack.c.l.b16 %v435
        %v548 = vunpack.c.h.b16 %v435
        %v549 = vunpack.c.l.b16 %v436
        %v550 = vunpack.c.h.b16 %v436
        %v551 = vunpack.c.l.b16 %v437
        %v552 = vunpack.c.h.b16 %v437
        %v553 = vunpack.c.l.b16 %v438
        %v554 = vunpack.c.h.b16 %v438
        %v555 = vunpack.c.l.b16 %v439
        %v556 = vunpack.c.h.b16 %v439
        %v557 = vunpack.c.l.b16 %v440
        %v558 = vunpack.c.h.b16 %v440
        %v559 = vunpack.c.l.b16 %v441
        %v560 = vunpack.c.h.b16 %v441
        %v561 = vunpack.c.l.b16 %v442
        %v562 = vunpack.c.h.b16 %v442
        %v563 = vunpack.c.l.b16 %v443
        %v564 = vunpack.c.h.b16 %v443
        %v565 = vunpack.c.l.b16 %v444
        %v566 = vunpack.c.h.b16 %v444
        %v567 = vunpack.c.l.b16 %v445
        %v568 = vunpack.c.h.b16 %v445
        %v569 = vunpack.c.l.b16 %v446
        %v570 = vunpack.c.h.b16 %v446
        %v571 = vunpack.c.l.b16 %v447
        %v572 = vunpack.c.h.b16 %v447
        %v573 = vunpack.c.l.b16 %v448
        %v574 = vunpack.c.h.b16 %v448
        %v575 = vunpack.c.l.b16 %v449
        %v576 = vunpack.c.h.b16 %v449
        %v577 = vunpack.c.l.b16 %v450
        %v578 = vunpack.c.h.b16 %v450
        %v579 = vpack.c.b16 %v517, %v515
        %v580 = vpack.c.b16 %v518, %v516
        %v581 = vpack.c.b16 %v521, %v519
        %v582 = vpack.c.b16 %v522, %v520
        %v583 = vpack.c.b16 %v525, %v523
        %v584 = vpack.c.b16 %v526, %v524
        %v585 = vpack.c.b16 %v529, %v527
        %v586 = vpack.c.b16 %v530, %v528
        %v587 = vpack.c.b16 %v533, %v531
        %v588 = vpack.c.b16 %v534, %v532
        %v589 = vpack.c.b16 %v537, %v535
        %v590 = vpack.c.b16 %v538, %v536
        %v591 = vpack.c.b16 %v541, %v539
        %v592 = vpack.c.b16 %v542, %v540
        %v593 = vpack.c.b16 %v545, %v543
        %v594 = vpack.c.b16 %v546, %v544
        %v595 = vpack.c.b16 %v549, %v547
        %v596 = vpack.c.b16 %v550, %v548
        %v597 = vpack.c.b16 %v553, %v551
        %v598 = vpack.c.b16 %v554, %v552
        %v599 = vpack.c.b16 %v557, %v555
        %v600 = vpack.c.b16 %v558, %v556
        %v601 = vpack.c.b16 %v561, %v559
        %v602 = vpack.c.b16 %v562, %v560
        %v603 = vpack.c.b16 %v565, %v563
        %v604 = vpack.c.b16 %v566, %v564
        %v605 = vpack.c.b16 %v569, %v567
        %v606 = vpack.c.b16 %v570, %v568
        %v607 = vpack.c.b16 %v573, %v571
        %v608 = vpack.c.b16 %v574, %v572
        %v609 = vpack.c.b16 %v577, %v575
        %v610 = vpack.c.b16 %v578, %v576
        %v675 = vunpack.c.l.b16 %v451
        %v676 = vunpack.c.h.b16 %v451
        %v677 = vunpack.c.l.b16 %v452
        %v678 = vunpack.c.h.b16 %v452
        %v679 = vunpack.c.l.b16 %v453
        %v680 = vunpack.c.h.b16 %v453
        %v681 = vunpack.c.l.b16 %v454
        %v682 = vunpack.c.h.b16 %v454
        %v683 = vunpack.c.l.b16 %v455
        %v684 = vunpack.c.h.b16 %v455
        %v685 = vunpack.c.l.b16 %v456
        %v686 = vunpack.c.h.b16 %v456
        %v687 = vunpack.c.l.b16 %v457
        %v688 = vunpack.c.h.b16 %v457
        %v689 = vunpack.c.l.b16 %v458
        %v690 = vunpack.c.h.b16 %v458
        %v691 = vunpack.c.l.b16 %v459
        %v692 = vunpack.c.h.b16 %v459
        %v693 = vunpack.c.l.b16 %v460
        %v694 = vunpack.c.h.b16 %v460
        %v695 = vunpack.c.l.b16 %v461
        %v696 = vunpack.c.h.b16 %v461
        %v697 = vunpack.c.l.b16 %v462
        %v698 = vunpack.c.h.b16 %v462
        %v699 = vunpack.c.l.b16 %v463
        %v700 = vunpack.c.h.b16 %v463
        %v701 = vunpack.c.l.b16 %v464
        %v702 = vunpack.c.h.b16 %v464
        %v703 = vunpack.c.l.b16 %v465
        %v704 = vunpack.c.h.b16 %v465
        %v705 = vunpack.c.l.b16 %v466
        %v706 = vunpack.c.h.b16 %v466
        %v707 = vunpack.c.l.b16 %v467
        %v708 = vunpack.c.h.b16 %v467
        %v709 = vunpack.c.l.b16 %v468
        %v710 = vunpack.c.h.b16 %v468
        %v711 = vunpack.c.l.b16 %v469
        %v712 = vunpack.c.h.b16 %v469
        %v713 = vunpack.c.l.b16 %v470
        %v714 = vunpack.c.h.b16 %v470
        %v715 = vunpack.c.l.b16 %v471
        %v716 = vunpack.c.h.b16 %v471
        %v717 = vunpack.c.l.b16 %v472
        %v718 = vunpack.c.h.b16 %v472
        %v719 = vunpack.c.l.b16 %v473
        %v720 = vunpack.c.h.b16 %v473
        %v721 = vunpack.c.l.b16 %v474
        %v722 = vunpack.c.h.b16 %v474
        %v723 = vunpack.c.l.b16 %v475
        %v724 = vunpack.c.h.b16 %v475
        %v725 = vunpack.c.l.b16 %v476
        %v726 = vunpack.c.h.b16 %v476
        %v727 = vunpack.c.l.b16 %v477
        %v728 = vunpack.c.h.b16 %v477
        %v729 = vunpack.c.l.b16 %v478
        %v730 = vunpack.c.h.b16 %v478
        %v731 = vunpack.c.l.b16 %v479
        %v732 = vunpack.c.h.b16 %v479
        %v733 = vunpack.c.l.b16 %v480
        %v734 = vunpack.c.h.b16 %v480
        %v735 = vunpack.c.l.b16 %v481
        %v736 = vunpack.c.h.b16 %v481
        %v737 = vunpack.c.l.b16 %v482
        %v738 = vunpack.c.h.b16 %v482
        %v739 = vpack.c.b16 %v677, %v675
        %v740 = vpack.c.b16 %v678, %v676
        %v741 = vpack.c.b16 %v681, %v679
        %v742 = vpack.c.b16 %v682, %v680
        %v743 = vpack.c.b16 %v685, %v683
        %v744 = vpack.c.b16 %v686, %v684
        %v745 = vpack.c.b16 %v689, %v687
        %v746 = vpack.c.b16 %v690, %v688
        %v747 = vpack.c.b16 %v693, %v691
        %v748 = vpack.c.b16 %v694, %v692
        %v749 = vpack.c.b16 %v697, %v695
        %v750 = vpack.c.b16 %v698, %v696
        %v751 = vpack.c.b16 %v701, %v699
        %v752 = vpack.c.b16 %v702, %v700
        %v753 = vpack.c.b16 %v705, %v703
        %v754 = vpack.c.b16 %v706, %v704
        %v755 = vpack.c.b16 %v709, %v707
        %v756 = vpack.c.b16 %v710, %v708
        %v757 = vpack.c.b16 %v713, %v711
        %v758 = vpack.c.b16 %v714, %v712
        %v759 = vpack.c.b16 %v717, %v715
        %v760 = vpack.c.b16 %v718, %v716
        %v761 = vpack.c.b16 %v721, %v719
        %v762 = vpack.c.b16 %v722, %v720
        %v763 = vpack.c.b16 %v725, %v723
        %v764 = vpack.c.b16 %v726, %v724
        %v765 = vpack.c.b16 %v729, %v727
        %v766 = vpack.c.b16 %v730, %v728
        %v767 = vpack.c.b16 %v733, %v731
        %v768 = vpack.c.b16 %v734, %v732
        %v769 = vpack.c.b16 %v737, %v735
        %v770 = vpack.c.b16 %v738, %v736
        %803 = vmatprep.subr.bf16.mxu0 %v754
        %804 = vmatpush1.bf16.msra.mxu0 %v753
        %805 = vmatprep.subr.bf16.mxu0 %v752
        %806 = vmatpush1.bf16.msra.mxu0 %v751
        %807 = vmatprep.subr.bf16.mxu0 %v750
        %808 = vmatpush1.bf16.msra.mxu0 %v749
        %809 = vmatprep.subr.bf16.mxu0 %v748
        %810 = vmatpush1.bf16.msra.mxu0 %v747
        %811 = vmatprep.subr.bf16.mxu0 %v746
        %812 = vmatpush1.bf16.msra.mxu0 %v745
        %813 = vmatprep.subr.bf16.mxu0 %v744
        %814 = vmatpush1.bf16.msra.mxu0 %v743
        %815 = vmatprep.subr.bf16.mxu0 %v742
        %816 = vmatpush1.bf16.msra.mxu0 %v741
        %817 = vmatprep.subr.bf16.mxu0 %v740
        %818 = vmatpush1.bf16.msra.mxu0 %v739
        %819 = vmatprep.subr.bf16.mxu0 %v770
        %820 = vmatpush2.bf16.msra.mxu0 %v769
        %821 = vmatprep.subr.bf16.mxu0 %v768
        %822 = vmatpush2.bf16.msra.mxu0 %v767
        %823 = vmatprep.subr.bf16.mxu0 %v766
        %824 = vmatpush2.bf16.msra.mxu0 %v765
        %825 = vmatprep.subr.bf16.mxu0 %v764
        %826 = vmatpush2.bf16.msra.mxu0 %v763
        %827 = vmatprep.subr.bf16.mxu0 %v762
        %828 = vmatpush2.bf16.msra.mxu0 %v761
        %829 = vmatprep.subr.bf16.mxu0 %v760
        %830 = vmatpush2.bf16.msra.mxu0 %v759
        %831 = vmatprep.subr.bf16.mxu0 %v758
        %832 = vmatpush2.bf16.msra.mxu0 %v757
        %833 = vmatprep.subr.bf16.mxu0 %v756
        %834 = vmatpush2.bf16.msra.mxu0 %v755
        %835 = vmatprep.mubr.bf16.mxu0 %v580
        %836 = vmatmul.mubr.bf16.gmra.mxu0 %v579
        %v837 = vpop.f32.mrf.mxu0
        %v838 = vadd.f32 0.0, %v837
        %v839 = vpop.f32.mrf.mxu0
        %v840 = vadd.f32 0.0, %v839
        %v841 = vpop.f32.mrf.mxu0
        %v842 = vadd.f32 0.0, %v841
        %v843 = vpop.f32.mrf.mxu0
        %v844 = vadd.f32 0.0, %v843
        %845 = vmatprep.mubr.bf16.mxu0 %v582
        %846 = vmatmul.mubr.bf16.gmra.mxu0 %v581
        %v847 = vpop.f32.mrf.mxu0
        %v848 = vadd.f32 0.0, %v847
        %v849 = vpop.f32.mrf.mxu0
        %v850 = vadd.f32 0.0, %v849
        %v851 = vpop.f32.mrf.mxu0
        %v852 = vadd.f32 0.0, %v851
        %v853 = vpop.f32.mrf.mxu0
        %v854 = vadd.f32 0.0, %v853
        %855 = vmatprep.mubr.bf16.mxu0 %v584
        %856 = vmatmul.mubr.bf16.gmra.mxu0 %v583
        %v857 = vpop.f32.mrf.mxu0
        %v858 = vadd.f32 0.0, %v857
        %v859 = vpop.f32.mrf.mxu0
        %v860 = vadd.f32 0.0, %v859
        %v861 = vpop.f32.mrf.mxu0
        %v862 = vadd.f32 0.0, %v861
        %v863 = vpop.f32.mrf.mxu0
        %v864 = vadd.f32 0.0, %v863
        %865 = vmatprep.mubr.bf16.mxu0 %v586
        %866 = vmatmul.mubr.bf16.gmra.mxu0 %v585
        %v867 = vpop.f32.mrf.mxu0
        %v868 = vadd.f32 0.0, %v867
        %v869 = vpop.f32.mrf.mxu0
        %v870 = vadd.f32 0.0, %v869
        %v871 = vpop.f32.mrf.mxu0
        %v872 = vadd.f32 0.0, %v871
        %v873 = vpop.f32.mrf.mxu0
        %v874 = vadd.f32 0.0, %v873
        %875 = vmatprep.mubr.bf16.mxu0 %v588
        %876 = vmatmul.mubr.bf16.gmra.mxu0 %v587
        %v877 = vpop.f32.mrf.mxu0
        %v878 = vadd.f32 0.0, %v877
        %v879 = vpop.f32.mrf.mxu0
        %v880 = vadd.f32 0.0, %v879
        %v881 = vpop.f32.mrf.mxu0
        %v882 = vadd.f32 0.0, %v881
        %v883 = vpop.f32.mrf.mxu0
        %v884 = vadd.f32 0.0, %v883
        %885 = vmatprep.mubr.bf16.mxu0 %v590
        %886 = vmatmul.mubr.bf16.gmra.mxu0 %v589
        %v887 = vpop.f32.mrf.mxu0
        %v888 = vadd.f32 0.0, %v887
        %v889 = vpop.f32.mrf.mxu0
        %v890 = vadd.f32 0.0, %v889
        %v891 = vpop.f32.mrf.mxu0
        %v892 = vadd.f32 0.0, %v891
        %v893 = vpop.f32.mrf.mxu0
        %v894 = vadd.f32 0.0, %v893
        %895 = vmatprep.mubr.bf16.mxu0 %v592
        %896 = vmatmul.mubr.bf16.gmra.mxu0 %v591
        %v897 = vpop.f32.mrf.mxu0
        %v898 = vadd.f32 0.0, %v897
        %v899 = vpop.f32.mrf.mxu0
        %v900 = vadd.f32 0.0, %v899
        %v901 = vpop.f32.mrf.mxu0
        %v902 = vadd.f32 0.0, %v901
        %v903 = vpop.f32.mrf.mxu0
        %v904 = vadd.f32 0.0, %v903
        %905 = vmatprep.mubr.bf16.mxu0 %v594
        %906 = vmatmul.mubr.bf16.gmra.mxu0 %v593
        %v907 = vpop.f32.mrf.mxu0
        %v908 = vadd.f32 0.0, %v907
        %v909 = vpop.f32.mrf.mxu0
        %v910 = vadd.f32 0.0, %v909
        %v911 = vpop.f32.mrf.mxu0
        %v912 = vadd.f32 0.0, %v911
        %v913 = vpop.f32.mrf.mxu0
        %v914 = vadd.f32 0.0, %v913
        %915 = vmatprep.mubr.bf16.mxu0 %v596
        %916 = vmatmul.mubr.bf16.gmra.mxu0 %v595
        %v917 = vpop.f32.mrf.mxu0
        %v918 = vadd.f32 0.0, %v917
        %v919 = vpop.f32.mrf.mxu0
        %v920 = vadd.f32 0.0, %v919
        %v921 = vpop.f32.mrf.mxu0
        %v922 = vadd.f32 0.0, %v921
        %v923 = vpop.f32.mrf.mxu0
        %v924 = vadd.f32 0.0, %v923
        %925 = vmatprep.mubr.bf16.mxu0 %v598
        %926 = vmatmul.mubr.bf16.gmra.mxu0 %v597
        %v927 = vpop.f32.mrf.mxu0
        %v928 = vadd.f32 0.0, %v927
        %v929 = vpop.f32.mrf.mxu0
        %v930 = vadd.f32 0.0, %v929
        %v931 = vpop.f32.mrf.mxu0
        %v932 = vadd.f32 0.0, %v931
        %v933 = vpop.f32.mrf.mxu0
        %v934 = vadd.f32 0.0, %v933
        %935 = vmatprep.mubr.bf16.mxu0 %v600
        %936 = vmatmul.mubr.bf16.gmra.mxu0 %v599
        %v937 = vpop.f32.mrf.mxu0
        %v938 = vadd.f32 0.0, %v937
        %v939 = vpop.f32.mrf.mxu0
        %v940 = vadd.f32 0.0, %v939
        %v941 = vpop.f32.mrf.mxu0
        %v942 = vadd.f32 0.0, %v941
        %v943 = vpop.f32.mrf.mxu0
        %v944 = vadd.f32 0.0, %v943
        %945 = vmatprep.mubr.bf16.mxu0 %v602
        %946 = vmatmul.mubr.bf16.gmra.mxu0 %v601
        %v947 = vpop.f32.mrf.mxu0
        %v948 = vadd.f32 0.0, %v947
        %v949 = vpop.f32.mrf.mxu0
        %v950 = vadd.f32 0.0, %v949
        %v951 = vpop.f32.mrf.mxu0
        %v952 = vadd.f32 0.0, %v951
        %v953 = vpop.f32.mrf.mxu0
        %v954 = vadd.f32 0.0, %v953
        %955 = vmatprep.mubr.bf16.mxu0 %v604
        %956 = vmatmul.mubr.bf16.gmra.mxu0 %v603
        %v957 = vpop.f32.mrf.mxu0
        %v958 = vadd.f32 0.0, %v957
        %v959 = vpop.f32.mrf.mxu0
        %v960 = vadd.f32 0.0, %v959
        %v961 = vpop.f32.mrf.mxu0
        %v962 = vadd.f32 0.0, %v961
        %v963 = vpop.f32.mrf.mxu0
        %v964 = vadd.f32 0.0, %v963
        %965 = vmatprep.mubr.bf16.mxu0 %v606
        %966 = vmatmul.mubr.bf16.gmra.mxu0 %v605
        %v967 = vpop.f32.mrf.mxu0
        %v968 = vadd.f32 0.0, %v967
        %v969 = vpop.f32.mrf.mxu0
        %v970 = vadd.f32 0.0, %v969
        %v971 = vpop.f32.mrf.mxu0
        %v972 = vadd.f32 0.0, %v971
        %v973 = vpop.f32.mrf.mxu0
        %v974 = vadd.f32 0.0, %v973
        %975 = vmatprep.mubr.bf16.mxu0 %v608
        %976 = vmatmul.mubr.bf16.gmra.mxu0 %v607
        %v977 = vpop.f32.mrf.mxu0
        %v978 = vadd.f32 0.0, %v977
        %v979 = vpop.f32.mrf.mxu0
        %v980 = vadd.f32 0.0, %v979
        %v981 = vpop.f32.mrf.mxu0
        %v982 = vadd.f32 0.0, %v981
        %v983 = vpop.f32.mrf.mxu0
        %v984 = vadd.f32 0.0, %v983
        %985 = vmatprep.mubr.bf16.mxu0 %v610
        %986 = vmatmul.mubr.bf16.gmra.mxu0 %v609
        %v987 = vpop.f32.mrf.mxu0
        %v988 = vadd.f32 0.0, %v987
        %v989 = vpop.f32.mrf.mxu0
        %v990 = vadd.f32 0.0, %v989
        %v991 = vpop.f32.mrf.mxu0
        %v992 = vadd.f32 0.0, %v991
        %v993 = vpop.f32.mrf.mxu0
        %v994 = vadd.f32 0.0, %v993
        %995 = vdwg.mxu0
        %v996 = vmax.f32 %v838, 0.0
        %v997 = vmax.f32 %v840, 0.0
        %v998 = vmax.f32 %v842, 0.0
        %v999 = vmax.f32 %v844, 0.0
        %v1000 = vmax.f32 %v848, 0.0
        %v1001 = vmax.f32 %v850, 0.0
        %v1002 = vmax.f32 %v852, 0.0
        %v1003 = vmax.f32 %v854, 0.0
        %v1004 = vmax.f32 %v858, 0.0
        %v1005 = vmax.f32 %v860, 0.0
        %v1006 = vmax.f32 %v862, 0.0
        %v1007 = vmax.f32 %v864, 0.0
        %v1008 = vmax.f32 %v868, 0.0
        %v1009 = vmax.f32 %v870, 0.0
        %v1010 = vmax.f32 %v872, 0.0
        %v1011 = vmax.f32 %v874, 0.0
        %v1012 = vmax.f32 %v878, 0.0
        %v1013 = vmax.f32 %v880, 0.0
        %v1014 = vmax.f32 %v882, 0.0
        %v1015 = vmax.f32 %v884, 0.0
        %v1016 = vmax.f32 %v888, 0.0
        %v1017 = vmax.f32 %v890, 0.0
        %v1018 = vmax.f32 %v892, 0.0
        %v1019 = vmax.f32 %v894, 0.0
        %v1020 = vmax.f32 %v898, 0.0
        %v1021 = vmax.f32 %v900, 0.0
        %v1022 = vmax.f32 %v902, 0.0
        %v1023 = vmax.f32 %v904, 0.0
        %v1024 = vmax.f32 %v908, 0.0
        %v1025 = vmax.f32 %v910, 0.0
        %v1026 = vmax.f32 %v912, 0.0
        %v1027 = vmax.f32 %v914, 0.0
        %v1028 = vmax.f32 %v918, 0.0
        %v1029 = vmax.f32 %v920, 0.0
        %v1030 = vmax.f32 %v922, 0.0
        %v1031 = vmax.f32 %v924, 0.0
        %v1032 = vmax.f32 %v928, 0.0
        %v1033 = vmax.f32 %v930, 0.0
        %v1034 = vmax.f32 %v932, 0.0
        %v1035 = vmax.f32 %v934, 0.0
        %v1036 = vmax.f32 %v938, 0.0
        %v1037 = vmax.f32 %v940, 0.0
        %v1038 = vmax.f32 %v942, 0.0
        %v1039 = vmax.f32 %v944, 0.0
        %v1040 = vmax.f32 %v948, 0.0
        %v1041 = vmax.f32 %v950, 0.0
        %v1042 = vmax.f32 %v952, 0.0
        %v1043 = vmax.f32 %v954, 0.0
        %v1044 = vmax.f32 %v958, 0.0
        %v1045 = vmax.f32 %v960, 0.0
        %v1046 = vmax.f32 %v962, 0.0
        %v1047 = vmax.f32 %v964, 0.0
        %v1048 = vmax.f32 %v968, 0.0
        %v1049 = vmax.f32 %v970, 0.0
        %v1050 = vmax.f32 %v972, 0.0
        %v1051 = vmax.f32 %v974, 0.0
        %v1052 = vmax.f32 %v978, 0.0
        %v1053 = vmax.f32 %v980, 0.0
        %v1054 = vmax.f32 %v982, 0.0
        %v1055 = vmax.f32 %v984, 0.0
        %v1056 = vmax.f32 %v988, 0.0
        %v1057 = vmax.f32 %v990, 0.0
        %v1058 = vmax.f32 %v992, 0.0
        %v1059 = vmax.f32 %v994, 0.0
        %v1060 = vpack.c.bf16 %v998, %v996
        %v1061 = vpack.c.bf16 %v999, %v997
        %v1062 = vpack.c.bf16 %v1002, %v1000
        %v1063 = vpack.c.bf16 %v1003, %v1001
        %v1064 = vpack.c.bf16 %v1006, %v1004
        %v1065 = vpack.c.bf16 %v1007, %v1005
        %v1066 = vpack.c.bf16 %v1010, %v1008
        %v1067 = vpack.c.bf16 %v1011, %v1009
        %v1068 = vpack.c.bf16 %v1014, %v1012
        %v1069 = vpack.c.bf16 %v1015, %v1013
        %v1070 = vpack.c.bf16 %v1018, %v1016
        %v1071 = vpack.c.bf16 %v1019, %v1017
        %v1072 = vpack.c.bf16 %v1022, %v1020
        %v1073 = vpack.c.bf16 %v1023, %v1021
        %v1074 = vpack.c.bf16 %v1026, %v1024
        %v1075 = vpack.c.bf16 %v1027, %v1025
        %v1076 = vpack.c.bf16 %v1030, %v1028
        %v1077 = vpack.c.bf16 %v1031, %v1029
        %v1078 = vpack.c.bf16 %v1034, %v1032
        %v1079 = vpack.c.bf16 %v1035, %v1033
        %v1080 = vpack.c.bf16 %v1038, %v1036
        %v1081 = vpack.c.bf16 %v1039, %v1037
        %v1082 = vpack.c.bf16 %v1042, %v1040
        %v1083 = vpack.c.bf16 %v1043, %v1041
        %v1084 = vpack.c.bf16 %v1046, %v1044
        %v1085 = vpack.c.bf16 %v1047, %v1045
        %v1086 = vpack.c.bf16 %v1050, %v1048
        %v1087 = vpack.c.bf16 %v1051, %v1049
        %v1088 = vpack.c.bf16 %v1054, %v1052
        %v1089 = vpack.c.bf16 %v1055, %v1053
        %v1090 = vpack.c.bf16 %v1058, %v1056
        %v1091 = vpack.c.bf16 %v1059, %v1057
        %v1124 = vunpack.c.l.b16 %v1060
        %v1125 = vunpack.c.l.b16 %v1061
        %v1126 = vunpack.c.h.b16 %v1060
        %v1127 = vunpack.c.h.b16 %v1061
        %v1128 = vunpack.c.l.b16 %v1062
        %v1129 = vunpack.c.l.b16 %v1063
        %v1130 = vunpack.c.h.b16 %v1062
        %v1131 = vunpack.c.h.b16 %v1063
        %v1132 = vunpack.c.l.b16 %v1064
        %v1133 = vunpack.c.l.b16 %v1065
        %v1134 = vunpack.c.h.b16 %v1064
        %v1135 = vunpack.c.h.b16 %v1065
        %v1136 = vunpack.c.l.b16 %v1066
        %v1137 = vunpack.c.l.b16 %v1067
        %v1138 = vunpack.c.h.b16 %v1066
        %v1139 = vunpack.c.h.b16 %v1067
        %v1140 = vunpack.c.l.b16 %v1068
        %v1141 = vunpack.c.l.b16 %v1069
        %v1142 = vunpack.c.h.b16 %v1068
        %v1143 = vunpack.c.h.b16 %v1069
        %v1144 = vunpack.c.l.b16 %v1070
        %v1145 = vunpack.c.l.b16 %v1071
        %v1146 = vunpack.c.h.b16 %v1070
        %v1147 = vunpack.c.h.b16 %v1071
        %v1148 = vunpack.c.l.b16 %v1072
        %v1149 = vunpack.c.l.b16 %v1073
        %v1150 = vunpack.c.h.b16 %v1072
        %v1151 = vunpack.c.h.b16 %v1073
        %v1152 = vunpack.c.l.b16 %v1074
        %v1153 = vunpack.c.l.b16 %v1075
        %v1154 = vunpack.c.h.b16 %v1074
        %v1155 = vunpack.c.h.b16 %v1075
        %v1156 = vunpack.c.l.b16 %v1076
        %v1157 = vunpack.c.l.b16 %v1077
        %v1158 = vunpack.c.h.b16 %v1076
        %v1159 = vunpack.c.h.b16 %v1077
        %v1160 = vunpack.c.l.b16 %v1078
        %v1161 = vunpack.c.l.b16 %v1079
        %v1162 = vunpack.c.h.b16 %v1078
        %v1163 = vunpack.c.h.b16 %v1079
        %v1164 = vunpack.c.l.b16 %v1080
        %v1165 = vunpack.c.l.b16 %v1081
        %v1166 = vunpack.c.h.b16 %v1080
        %v1167 = vunpack.c.h.b16 %v1081
        %v1168 = vunpack.c.l.b16 %v1082
        %v1169 = vunpack.c.l.b16 %v1083
        %v1170 = vunpack.c.h.b16 %v1082
        %v1171 = vunpack.c.h.b16 %v1083
        %v1172 = vunpack.c.l.b16 %v1084
        %v1173 = vunpack.c.l.b16 %v1085
        %v1174 = vunpack.c.h.b16 %v1084
        %v1175 = vunpack.c.h.b16 %v1085
        %v1176 = vunpack.c.l.b16 %v1086
        %v1177 = vunpack.c.l.b16 %v1087
        %v1178 = vunpack.c.h.b16 %v1086
        %v1179 = vunpack.c.h.b16 %v1087
        %v1180 = vunpack.c.l.b16 %v1088
        %v1181 = vunpack.c.l.b16 %v1089
        %v1182 = vunpack.c.h.b16 %v1088
        %v1183 = vunpack.c.h.b16 %v1089
        %v1184 = vunpack.c.l.b16 %v1090
        %v1185 = vunpack.c.l.b16 %v1091
        %v1186 = vunpack.c.h.b16 %v1090
        %v1187 = vunpack.c.h.b16 %v1091
        %v1188 = vpack.c.b16 %v1125, %v1124
        %v1189 = vpack.c.b16 %v1127, %v1126
        %v1190 = vpack.c.b16 %v1129, %v1128
        %v1191 = vpack.c.b16 %v1131, %v1130
        %v1192 = vpack.c.b16 %v1133, %v1132
        %v1193 = vpack.c.b16 %v1135, %v1134
        %v1194 = vpack.c.b16 %v1137, %v1136
        %v1195 = vpack.c.b16 %v1139, %v1138
        %v1196 = vpack.c.b16 %v1141, %v1140
        %v1197 = vpack.c.b16 %v1143, %v1142
        %v1198 = vpack.c.b16 %v1145, %v1144
        %v1199 = vpack.c.b16 %v1147, %v1146
        %v1200 = vpack.c.b16 %v1149, %v1148
        %v1201 = vpack.c.b16 %v1151, %v1150
        %v1202 = vpack.c.b16 %v1153, %v1152
        %v1203 = vpack.c.b16 %v1155, %v1154
        %v1204 = vpack.c.b16 %v1157, %v1156
        %v1205 = vpack.c.b16 %v1159, %v1158
        %v1206 = vpack.c.b16 %v1161, %v1160
        %v1207 = vpack.c.b16 %v1163, %v1162
        %v1208 = vpack.c.b16 %v1165, %v1164
        %v1209 = vpack.c.b16 %v1167, %v1166
        %v1210 = vpack.c.b16 %v1169, %v1168
        %v1211 = vpack.c.b16 %v1171, %v1170
        %v1212 = vpack.c.b16 %v1173, %v1172
        %v1213 = vpack.c.b16 %v1175, %v1174
        %v1214 = vpack.c.b16 %v1177, %v1176
        %v1215 = vpack.c.b16 %v1179, %v1178
        %v1216 = vpack.c.b16 %v1181, %v1180
        %v1217 = vpack.c.b16 %v1183, %v1182
        %v1218 = vpack.c.b16 %v1185, %v1184
        %v1219 = vpack.c.b16 %v1187, %v1186
        %1252 = vst [vmem:[%s404] sm:$0xff] %v1188
        %1253 = vst [vmem:[%s404 + $0x8] sm:$0xff] %v1189
        %1254 = vst [vmem:[%s404 + $0x10] sm:$0xff] %v1190
        %1255 = vst [vmem:[%s404 + $0x18] sm:$0xff] %v1191
        %1256 = vst [vmem:[%s404 + $0x20] sm:$0xff] %v1192
        %1257 = vst [vmem:[%s404 + $0x28] sm:$0xff] %v1193
        %1258 = vst [vmem:[%s404 + $0x30] sm:$0xff] %v1194
        %1259 = vst [vmem:[%s404 + $0x38] sm:$0xff] %v1195
        %1260 = vst [vmem:[%s404 + $0x40] sm:$0xff] %v1196
        %1261 = vst [vmem:[%s404 + $0x48] sm:$0xff] %v1197
        %1262 = vst [vmem:[%s404 + $0x50] sm:$0xff] %v1198
        %1263 = vst [vmem:[%s404 + $0x58] sm:$0xff] %v1199
        %1264 = vst [vmem:[%s404 + $0x60] sm:$0xff] %v1200
        %1265 = vst [vmem:[%s404 + $0x68] sm:$0xff] %v1201
        %1266 = vst [vmem:[%s404 + $0x70] sm:$0xff] %v1202
        %1267 = vst [vmem:[%s404 + $0x78] sm:$0xff] %v1203
        %1268 = vst [vmem:[%s404 + $0x80] sm:$0xff] %v1204
        %1269 = vst [vmem:[%s404 + $0x88] sm:$0xff] %v1205
        %1270 = vst [vmem:[%s404 + $0x90] sm:$0xff] %v1206
        %1271 = vst [vmem:[%s404 + $0x98] sm:$0xff] %v1207
        %1272 = vst [vmem:[%s404 + $0xa0] sm:$0xff] %v1208
        %1273 = vst [vmem:[%s404 + $0xa8] sm:$0xff] %v1209
        %1274 = vst [vmem:[%s404 + $0xb0] sm:$0xff] %v1210
        %1275 = vst [vmem:[%s404 + $0xb8] sm:$0xff] %v1211
        %1276 = vst [vmem:[%s404 + $0xc0] sm:$0xff] %v1212
        %1277 = vst [vmem:[%s404 + $0xc8] sm:$0xff] %v1213
        %1278 = vst [vmem:[%s404 + $0xd0] sm:$0xff] %v1214
        %1279 = vst [vmem:[%s404 + $0xd8] sm:$0xff] %v1215
        %1280 = vst [vmem:[%s404 + $0xe0] sm:$0xff] %v1216
        %1281 = vst [vmem:[%s404 + $0xe8] sm:$0xff] %v1217
        %1282 = vst [vmem:[%s404 + $0xf0] sm:$0xff] %v1218
        %1283 = vst [vmem:[%s404 + $0xf8] sm:$0xff] %v1219
        %p1284 = scmp.eq.s32.totalorder %s35, 0
        // Predicated region
        $region53: #{tpu_custom_call.1} parent=35 // pred_check
          %p1285 = pneg %p1284
        $region54: #{tpu_custom_call.1} parent=35 // pred_check_branch
          %1287 = sbr.rel (%p1285) target = $region56
        $region55: #{tpu_custom_call.1} parent=35 // pred_region
          %v1288 = vld [vmem:[#allocation5] sm:$0x3]
          %v1290 = vlaneseq
          %v1291 = vshrl.u32 %v1290, 7
          %v1292 = vsub.s32 0, %v1291
          %v1293 = vrot.slane %v1288, %v1292
          %v1294 = vlaneseq
          %v1295 = vshrl.u32 %v1294, 7
          %v1296 = vsub.s32 1, %v1295
          %v1297 = vrot.slane %v1288, %v1296
          %1300 = vst [vmem:[%s397] sm:$0xff] %v1293
          %1301 = vst [vmem:[%s397 + $0x8] sm:$0xff] %v1297
          %1302 = vst [vmem:[%s397 + $0x10] sm:$0xff] %v1293
          %1303 = vst [vmem:[%s397 + $0x18] sm:$0xff] %v1297
          %1304 = vst [vmem:[%s397 + $0x20] sm:$0xff] %v1293
          %1305 = vst [vmem:[%s397 + $0x28] sm:$0xff] %v1297
          %1306 = vst [vmem:[%s397 + $0x30] sm:$0xff] %v1293
          %1307 = vst [vmem:[%s397 + $0x38] sm:$0xff] %v1297
          %1308 = vst [vmem:[%s397 + $0x40] sm:$0xff] %v1293
          %1309 = vst [vmem:[%s397 + $0x48] sm:$0xff] %v1297
          %1310 = vst [vmem:[%s397 + $0x50] sm:$0xff] %v1293
          %1311 = vst [vmem:[%s397 + $0x58] sm:$0xff] %v1297
          %1312 = vst [vmem:[%s397 + $0x60] sm:$0xff] %v1293
          %1313 = vst [vmem:[%s397 + $0x68] sm:$0xff] %v1297
          %1314 = vst [vmem:[%s397 + $0x70] sm:$0xff] %v1293
          %1315 = vst [vmem:[%s397 + $0x78] sm:$0xff] %v1297
          %1316 = vst [vmem:[%s397 + $0x80] sm:$0xff] %v1293
          %1317 = vst [vmem:[%s397 + $0x88] sm:$0xff] %v1297
          %1318 = vst [vmem:[%s397 + $0x90] sm:$0xff] %v1293
          %1319 = vst [vmem:[%s397 + $0x98] sm:$0xff] %v1297
          %1320 = vst [vmem:[%s397 + $0xa0] sm:$0xff] %v1293
          %1321 = vst [vmem:[%s397 + $0xa8] sm:$0xff] %v1297
          %1322 = vst [vmem:[%s397 + $0xb0] sm:$0xff] %v1293
          %1323 = vst [vmem:[%s397 + $0xb8] sm:$0xff] %v1297
          %1324 = vst [vmem:[%s397 + $0xc0] sm:$0xff] %v1293
          %1325 = vst [vmem:[%s397 + $0xc8] sm:$0xff] %v1297
          %1326 = vst [vmem:[%s397 + $0xd0] sm:$0xff] %v1293
          %1327 = vst [vmem:[%s397 + $0xd8] sm:$0xff] %v1297
          %1328 = vst [vmem:[%s397 + $0xe0] sm:$0xff] %v1293
          %1329 = vst [vmem:[%s397 + $0xe8] sm:$0xff] %v1297
          %1330 = vst [vmem:[%s397 + $0xf0] sm:$0xff] %v1293
          %1331 = vst [vmem:[%s397 + $0xf8] sm:$0xff] %v1297
          %1332 = vst [vmem:[%s397 + $0x100] sm:$0xff] %v1293
          %1333 = vst [vmem:[%s397 + $0x108] sm:$0xff] %v1297
          %1334 = vst [vmem:[%s397 + $0x110] sm:$0xff] %v1293
          %1335 = vst [vmem:[%s397 + $0x118] sm:$0xff] %v1297
          %1336 = vst [vmem:[%s397 + $0x120] sm:$0xff] %v1293
          %1337 = vst [vmem:[%s397 + $0x128] sm:$0xff] %v1297
          %1338 = vst [vmem:[%s397 + $0x130] sm:$0xff] %v1293
          %1339 = vst [vmem:[%s397 + $0x138] sm:$0xff] %v1297
          %1340 = vst [vmem:[%s397 + $0x140] sm:$0xff] %v1293
          %1341 = vst [vmem:[%s397 + $0x148] sm:$0xff] %v1297
          %1342 = vst [vmem:[%s397 + $0x150] sm:$0xff] %v1293
          %1343 = vst [vmem:[%s397 + $0x158] sm:$0xff] %v1297
          %1344 = vst [vmem:[%s397 + $0x160] sm:$0xff] %v1293
          %1345 = vst [vmem:[%s397 + $0x168] sm:$0xff] %v1297
          %1346 = vst [vmem:[%s397 + $0x170] sm:$0xff] %v1293
          %1347 = vst [vmem:[%s397 + $0x178] sm:$0xff] %v1297
          %1348 = vst [vmem:[%s397 + $0x180] sm:$0xff] %v1293
          %1349 = vst [vmem:[%s397 + $0x188] sm:$0xff] %v1297
          %1350 = vst [vmem:[%s397 + $0x190] sm:$0xff] %v1293
          %1351 = vst [vmem:[%s397 + $0x198] sm:$0xff] %v1297
          %1352 = vst [vmem:[%s397 + $0x1a0] sm:$0xff] %v1293
          %1353 = vst [vmem:[%s397 + $0x1a8] sm:$0xff] %v1297
          %1354 = vst [vmem:[%s397 + $0x1b0] sm:$0xff] %v1293
          %1355 = vst [vmem:[%s397 + $0x1b8] sm:$0xff] %v1297
          %1356 = vst [vmem:[%s397 + $0x1c0] sm:$0xff] %v1293
          %1357 = vst [vmem:[%s397 + $0x1c8] sm:$0xff] %v1297
          %1358 = vst [vmem:[%s397 + $0x1d0] sm:$0xff] %v1293
          %1359 = vst [vmem:[%s397 + $0x1d8] sm:$0xff] %v1297
          %1360 = vst [vmem:[%s397 + $0x1e0] sm:$0xff] %v1293
          %1361 = vst [vmem:[%s397 + $0x1e8] sm:$0xff] %v1297
          %1362 = vst [vmem:[%s397 + $0x1f0] sm:$0xff] %v1293
          %1363 = vst [vmem:[%s397 + $0x1f8] sm:$0xff] %v1297
        $region56: #{tpu_custom_call.1} parent=35 // pred_fallthru
          _
        %v1364 = vld [vmem:[%s397] sm:$0xff]
        %v1365 = vld [vmem:[%s397 + $0x8] sm:$0xff]
        %v1366 = vld [vmem:[%s397 + $0x10] sm:$0xff]
        %v1367 = vld [vmem:[%s397 + $0x18] sm:$0xff]
        %v1368 = vld [vmem:[%s397 + $0x20] sm:$0xff]
        %v1369 = vld [vmem:[%s397 + $0x28] sm:$0xff]
        %v1370 = vld [vmem:[%s397 + $0x30] sm:$0xff]
        %v1371 = vld [vmem:[%s397 + $0x38] sm:$0xff]
        %v1372 = vld [vmem:[%s397 + $0x40] sm:$0xff]
        %v1373 = vld [vmem:[%s397 + $0x48] sm:$0xff]
        %v1374 = vld [vmem:[%s397 + $0x50] sm:$0xff]
        %v1375 = vld [vmem:[%s397 + $0x58] sm:$0xff]
        %v1376 = vld [vmem:[%s397 + $0x60] sm:$0xff]
        %v1377 = vld [vmem:[%s397 + $0x68] sm:$0xff]
        %v1378 = vld [vmem:[%s397 + $0x70] sm:$0xff]
        %v1379 = vld [vmem:[%s397 + $0x78] sm:$0xff]
        %v1380 = vld [vmem:[%s397 + $0x80] sm:$0xff]
        %v1381 = vld [vmem:[%s397 + $0x88] sm:$0xff]
        %v1382 = vld [vmem:[%s397 + $0x90] sm:$0xff]
        %v1383 = vld [vmem:[%s397 + $0x98] sm:$0xff]
        %v1384 = vld [vmem:[%s397 + $0xa0] sm:$0xff]
        %v1385 = vld [vmem:[%s397 + $0xa8] sm:$0xff]
        %v1386 = vld [vmem:[%s397 + $0xb0] sm:$0xff]
        %v1387 = vld [vmem:[%s397 + $0xb8] sm:$0xff]
        %v1388 = vld [vmem:[%s397 + $0xc0] sm:$0xff]
        %v1389 = vld [vmem:[%s397 + $0xc8] sm:$0xff]
        %v1390 = vld [vmem:[%s397 + $0xd0] sm:$0xff]
        %v1391 = vld [vmem:[%s397 + $0xd8] sm:$0xff]
        %v1392 = vld [vmem:[%s397 + $0xe0] sm:$0xff]
        %v1393 = vld [vmem:[%s397 + $0xe8] sm:$0xff]
        %v1394 = vld [vmem:[%s397 + $0xf0] sm:$0xff]
        %v1395 = vld [vmem:[%s397 + $0xf8] sm:$0xff]
        %v1396 = vld [vmem:[%s397 + $0x100] sm:$0xff]
        %v1397 = vld [vmem:[%s397 + $0x108] sm:$0xff]
        %v1398 = vld [vmem:[%s397 + $0x110] sm:$0xff]
        %v1399 = vld [vmem:[%s397 + $0x118] sm:$0xff]
        %v1400 = vld [vmem:[%s397 + $0x120] sm:$0xff]
        %v1401 = vld [vmem:[%s397 + $0x128] sm:$0xff]
        %v1402 = vld [vmem:[%s397 + $0x130] sm:$0xff]
        %v1403 = vld [vmem:[%s397 + $0x138] sm:$0xff]
        %v1404 = vld [vmem:[%s397 + $0x140] sm:$0xff]
        %v1405 = vld [vmem:[%s397 + $0x148] sm:$0xff]
        %v1406 = vld [vmem:[%s397 + $0x150] sm:$0xff]
        %v1407 = vld [vmem:[%s397 + $0x158] sm:$0xff]
        %v1408 = vld [vmem:[%s397 + $0x160] sm:$0xff]
        %v1409 = vld [vmem:[%s397 + $0x168] sm:$0xff]
        %v1410 = vld [vmem:[%s397 + $0x170] sm:$0xff]
        %v1411 = vld [vmem:[%s397 + $0x178] sm:$0xff]
        %v1412 = vld [vmem:[%s397 + $0x180] sm:$0xff]
        %v1413 = vld [vmem:[%s397 + $0x188] sm:$0xff]
        %v1414 = vld [vmem:[%s397 + $0x190] sm:$0xff]
        %v1415 = vld [vmem:[%s397 + $0x198] sm:$0xff]
        %v1416 = vld [vmem:[%s397 + $0x1a0] sm:$0xff]
        %v1417 = vld [vmem:[%s397 + $0x1a8] sm:$0xff]
        %v1418 = vld [vmem:[%s397 + $0x1b0] sm:$0xff]
        %v1419 = vld [vmem:[%s397 + $0x1b8] sm:$0xff]
        %v1420 = vld [vmem:[%s397 + $0x1c0] sm:$0xff]
        %v1421 = vld [vmem:[%s397 + $0x1c8] sm:$0xff]
        %v1422 = vld [vmem:[%s397 + $0x1d0] sm:$0xff]
        %v1423 = vld [vmem:[%s397 + $0x1d8] sm:$0xff]
        %v1424 = vld [vmem:[%s397 + $0x1e0] sm:$0xff]
        %v1425 = vld [vmem:[%s397 + $0x1e8] sm:$0xff]
        %v1426 = vld [vmem:[%s397 + $0x1f0] sm:$0xff]
        %v1427 = vld [vmem:[%s397 + $0x1f8] sm:$0xff]
        %v1428 = vld [vmem:[%s363] sm:$0xff]
        %v1429 = vld [vmem:[%s363 + $0x8] sm:$0xff]
        %v1430 = vld [vmem:[%s363 + $0x10] sm:$0xff]
        %v1431 = vld [vmem:[%s363 + $0x18] sm:$0xff]
        %v1432 = vld [vmem:[%s363 + $0x20] sm:$0xff]
        %v1433 = vld [vmem:[%s363 + $0x28] sm:$0xff]
        %v1434 = vld [vmem:[%s363 + $0x30] sm:$0xff]
        %v1435 = vld [vmem:[%s363 + $0x38] sm:$0xff]
        %v1436 = vld [vmem:[%s363 + $0x40] sm:$0xff]
        %v1437 = vld [vmem:[%s363 + $0x48] sm:$0xff]
        %v1438 = vld [vmem:[%s363 + $0x50] sm:$0xff]
        %v1439 = vld [vmem:[%s363 + $0x58] sm:$0xff]
        %v1440 = vld [vmem:[%s363 + $0x60] sm:$0xff]
        %v1441 = vld [vmem:[%s363 + $0x68] sm:$0xff]
        %v1442 = vld [vmem:[%s363 + $0x70] sm:$0xff]
        %v1443 = vld [vmem:[%s363 + $0x78] sm:$0xff]
        %v1444 = vld [vmem:[%s363 + $0x80] sm:$0xff]
        %v1445 = vld [vmem:[%s363 + $0x88] sm:$0xff]
        %v1446 = vld [vmem:[%s363 + $0x90] sm:$0xff]
        %v1447 = vld [vmem:[%s363 + $0x98] sm:$0xff]
        %v1448 = vld [vmem:[%s363 + $0xa0] sm:$0xff]
        %v1449 = vld [vmem:[%s363 + $0xa8] sm:$0xff]
        %v1450 = vld [vmem:[%s363 + $0xb0] sm:$0xff]
        %v1451 = vld [vmem:[%s363 + $0xb8] sm:$0xff]
        %v1452 = vld [vmem:[%s363 + $0xc0] sm:$0xff]
        %v1453 = vld [vmem:[%s363 + $0xc8] sm:$0xff]
        %v1454 = vld [vmem:[%s363 + $0xd0] sm:$0xff]
        %v1455 = vld [vmem:[%s363 + $0xd8] sm:$0xff]
        %v1456 = vld [vmem:[%s363 + $0xe0] sm:$0xff]
        %v1457 = vld [vmem:[%s363 + $0xe8] sm:$0xff]
        %v1458 = vld [vmem:[%s363 + $0xf0] sm:$0xff]
        %v1459 = vld [vmem:[%s363 + $0xf8] sm:$0xff]
        %v1492 = vunpack.c.l.b16 %v1428
        %v1493 = vunpack.c.h.b16 %v1428
        %v1494 = vunpack.c.l.b16 %v1429
        %v1495 = vunpack.c.h.b16 %v1429
        %v1496 = vunpack.c.l.b16 %v1430
        %v1497 = vunpack.c.h.b16 %v1430
        %v1498 = vunpack.c.l.b16 %v1431
        %v1499 = vunpack.c.h.b16 %v1431
        %v1500 = vunpack.c.l.b16 %v1432
        %v1501 = vunpack.c.h.b16 %v1432
        %v1502 = vunpack.c.l.b16 %v1433
        %v1503 = vunpack.c.h.b16 %v1433
        %v1504 = vunpack.c.l.b16 %v1434
        %v1505 = vunpack.c.h.b16 %v1434
        %v1506 = vunpack.c.l.b16 %v1435
        %v1507 = vunpack.c.h.b16 %v1435
        %v1508 = vunpack.c.l.b16 %v1436
        %v1509 = vunpack.c.h.b16 %v1436
        %v1510 = vunpack.c.l.b16 %v1437
        %v1511 = vunpack.c.h.b16 %v1437
        %v1512 = vunpack.c.l.b16 %v1438
        %v1513 = vunpack.c.h.b16 %v1438
        %v1514 = vunpack.c.l.b16 %v1439
        %v1515 = vunpack.c.h.b16 %v1439
        %v1516 = vunpack.c.l.b16 %v1440
        %v1517 = vunpack.c.h.b16 %v1440
        %v1518 = vunpack.c.l.b16 %v1441
        %v1519 = vunpack.c.h.b16 %v1441
        %v1520 = vunpack.c.l.b16 %v1442
        %v1521 = vunpack.c.h.b16 %v1442
        %v1522 = vunpack.c.l.b16 %v1443
        %v1523 = vunpack.c.h.b16 %v1443
        %v1524 = vunpack.c.l.b16 %v1444
        %v1525 = vunpack.c.h.b16 %v1444
        %v1526 = vunpack.c.l.b16 %v1445
        %v1527 = vunpack.c.h.b16 %v1445
        %v1528 = vunpack.c.l.b16 %v1446
        %v1529 = vunpack.c.h.b16 %v1446
        %v1530 = vunpack.c.l.b16 %v1447
        %v1531 = vunpack.c.h.b16 %v1447
        %v1532 = vunpack.c.l.b16 %v1448
        %v1533 = vunpack.c.h.b16 %v1448
        %v1534 = vunpack.c.l.b16 %v1449
        %v1535 = vunpack.c.h.b16 %v1449
        %v1536 = vunpack.c.l.b16 %v1450
        %v1537 = vunpack.c.h.b16 %v1450
        %v1538 = vunpack.c.l.b16 %v1451
        %v1539 = vunpack.c.h.b16 %v1451
        %v1540 = vunpack.c.l.b16 %v1452
        %v1541 = vunpack.c.h.b16 %v1452
        %v1542 = vunpack.c.l.b16 %v1453
        %v1543 = vunpack.c.h.b16 %v1453
        %v1544 = vunpack.c.l.b16 %v1454
        %v1545 = vunpack.c.h.b16 %v1454
        %v1546 = vunpack.c.l.b16 %v1455
        %v1547 = vunpack.c.h.b16 %v1455
        %v1548 = vunpack.c.l.b16 %v1456
        %v1549 = vunpack.c.h.b16 %v1456
        %v1550 = vunpack.c.l.b16 %v1457
        %v1551 = vunpack.c.h.b16 %v1457
        %v1552 = vunpack.c.l.b16 %v1458
        %v1553 = vunpack.c.h.b16 %v1458
        %v1554 = vunpack.c.l.b16 %v1459
        %v1555 = vunpack.c.h.b16 %v1459
        %v1556 = vpack.c.b16 %v1494, %v1492
        %v1557 = vpack.c.b16 %v1495, %v1493
        %v1558 = vpack.c.b16 %v1498, %v1496
        %v1559 = vpack.c.b16 %v1499, %v1497
        %v1560 = vpack.c.b16 %v1502, %v1500
        %v1561 = vpack.c.b16 %v1503, %v1501
        %v1562 = vpack.c.b16 %v1506, %v1504
        %v1563 = vpack.c.b16 %v1507, %v1505
        %v1564 = vpack.c.b16 %v1510, %v1508
        %v1565 = vpack.c.b16 %v1511, %v1509
        %v1566 = vpack.c.b16 %v1514, %v1512
        %v1567 = vpack.c.b16 %v1515, %v1513
        %v1568 = vpack.c.b16 %v1518, %v1516
        %v1569 = vpack.c.b16 %v1519, %v1517
        %v1570 = vpack.c.b16 %v1522, %v1520
        %v1571 = vpack.c.b16 %v1523, %v1521
        %v1572 = vpack.c.b16 %v1526, %v1524
        %v1573 = vpack.c.b16 %v1527, %v1525
        %v1574 = vpack.c.b16 %v1530, %v1528
        %v1575 = vpack.c.b16 %v1531, %v1529
        %v1576 = vpack.c.b16 %v1534, %v1532
        %v1577 = vpack.c.b16 %v1535, %v1533
        %v1578 = vpack.c.b16 %v1538, %v1536
        %v1579 = vpack.c.b16 %v1539, %v1537
        %v1580 = vpack.c.b16 %v1542, %v1540
        %v1581 = vpack.c.b16 %v1543, %v1541
        %v1582 = vpack.c.b16 %v1546, %v1544
        %v1583 = vpack.c.b16 %v1547, %v1545
        %v1584 = vpack.c.b16 %v1550, %v1548
        %v1585 = vpack.c.b16 %v1551, %v1549
        %v1586 = vpack.c.b16 %v1554, %v1552
        %v1587 = vpack.c.b16 %v1555, %v1553
        %1620 = vmatprep.subr.bf16.mxu0 %v1571
        %1621 = vmatpush1.bf16.msra.mxu0 %v1570
        %1622 = vmatprep.subr.bf16.mxu0 %v1569
        %1623 = vmatpush1.bf16.msra.mxu0 %v1568
        %1624 = vmatprep.subr.bf16.mxu0 %v1567
        %1625 = vmatpush1.bf16.msra.mxu0 %v1566
        %1626 = vmatprep.subr.bf16.mxu0 %v1565
        %1627 = vmatpush1.bf16.msra.mxu0 %v1564
        %1628 = vmatprep.subr.bf16.mxu0 %v1563
        %1629 = vmatpush1.bf16.msra.mxu0 %v1562
        %1630 = vmatprep.subr.bf16.mxu0 %v1561
        %1631 = vmatpush1.bf16.msra.mxu0 %v1560
        %1632 = vmatprep.subr.bf16.mxu0 %v1559
        %1633 = vmatpush1.bf16.msra.mxu0 %v1558
        %1634 = vmatprep.subr.bf16.mxu0 %v1557
        %1635 = vmatpush1.bf16.msra.mxu0 %v1556
        %1636 = vmatprep.subr.bf16.mxu0 %v1587
        %1637 = vmatpush2.bf16.msra.mxu0 %v1586
        %1638 = vmatprep.subr.bf16.mxu0 %v1585
        %1639 = vmatpush2.bf16.msra.mxu0 %v1584
        %1640 = vmatprep.subr.bf16.mxu0 %v1583
        %1641 = vmatpush2.bf16.msra.mxu0 %v1582
        %1642 = vmatprep.subr.bf16.mxu0 %v1581
        %1643 = vmatpush2.bf16.msra.mxu0 %v1580
        %1644 = vmatprep.subr.bf16.mxu0 %v1579
        %1645 = vmatpush2.bf16.msra.mxu0 %v1578
        %1646 = vmatprep.subr.bf16.mxu0 %v1577
        %1647 = vmatpush2.bf16.msra.mxu0 %v1576
        %1648 = vmatprep.subr.bf16.mxu0 %v1575
        %1649 = vmatpush2.bf16.msra.mxu0 %v1574
        %1650 = vmatprep.subr.bf16.mxu0 %v1573
        %1651 = vmatpush2.bf16.msra.mxu0 %v1572
        %1652 = vmatprep.mubr.bf16.mxu0 %v1061
        %1653 = vmatmul.mubr.bf16.gmra.mxu0 %v1060
        %v1654 = vpop.f32.mrf.mxu0
        %v1655 = vadd.f32 0.0, %v1654
        %v1656 = vpop.f32.mrf.mxu0
        %v1657 = vadd.f32 0.0, %v1656
        %v1658 = vpop.f32.mrf.mxu0
        %v1659 = vadd.f32 0.0, %v1658
        %v1660 = vpop.f32.mrf.mxu0
        %v1661 = vadd.f32 0.0, %v1660
        %1662 = vmatprep.mubr.bf16.mxu0 %v1063
        %1663 = vmatmul.mubr.bf16.gmra.mxu0 %v1062
        %v1664 = vpop.f32.mrf.mxu0
        %v1665 = vadd.f32 0.0, %v1664
        %v1666 = vpop.f32.mrf.mxu0
        %v1667 = vadd.f32 0.0, %v1666
        %v1668 = vpop.f32.mrf.mxu0
        %v1669 = vadd.f32 0.0, %v1668
        %v1670 = vpop.f32.mrf.mxu0
        %v1671 = vadd.f32 0.0, %v1670
        %1672 = vmatprep.mubr.bf16.mxu0 %v1065
        %1673 = vmatmul.mubr.bf16.gmra.mxu0 %v1064
        %v1674 = vpop.f32.mrf.mxu0
        %v1675 = vadd.f32 0.0, %v1674
        %v1676 = vpop.f32.mrf.mxu0
        %v1677 = vadd.f32 0.0, %v1676
        %v1678 = vpop.f32.mrf.mxu0
        %v1679 = vadd.f32 0.0, %v1678
        %v1680 = vpop.f32.mrf.mxu0
        %v1681 = vadd.f32 0.0, %v1680
        %1682 = vmatprep.mubr.bf16.mxu0 %v1067
        %1683 = vmatmul.mubr.bf16.gmra.mxu0 %v1066
        %v1684 = vpop.f32.mrf.mxu0
        %v1685 = vadd.f32 0.0, %v1684
        %v1686 = vpop.f32.mrf.mxu0
        %v1687 = vadd.f32 0.0, %v1686
        %v1688 = vpop.f32.mrf.mxu0
        %v1689 = vadd.f32 0.0, %v1688
        %v1690 = vpop.f32.mrf.mxu0
        %v1691 = vadd.f32 0.0, %v1690
        %1692 = vmatprep.mubr.bf16.mxu0 %v1069
        %1693 = vmatmul.mubr.bf16.gmra.mxu0 %v1068
        %v1694 = vpop.f32.mrf.mxu0
        %v1695 = vadd.f32 0.0, %v1694
        %v1696 = vpop.f32.mrf.mxu0
        %v1697 = vadd.f32 0.0, %v1696
        %v1698 = vpop.f32.mrf.mxu0
        %v1699 = vadd.f32 0.0, %v1698
        %v1700 = vpop.f32.mrf.mxu0
        %v1701 = vadd.f32 0.0, %v1700
        %1702 = vmatprep.mubr.bf16.mxu0 %v1071
        %1703 = vmatmul.mubr.bf16.gmra.mxu0 %v1070
        %v1704 = vpop.f32.mrf.mxu0
        %v1705 = vadd.f32 0.0, %v1704
        %v1706 = vpop.f32.mrf.mxu0
        %v1707 = vadd.f32 0.0, %v1706
        %v1708 = vpop.f32.mrf.mxu0
        %v1709 = vadd.f32 0.0, %v1708
        %v1710 = vpop.f32.mrf.mxu0
        %v1711 = vadd.f32 0.0, %v1710
        %1712 = vmatprep.mubr.bf16.mxu0 %v1073
        %1713 = vmatmul.mubr.bf16.gmra.mxu0 %v1072
        %v1714 = vpop.f32.mrf.mxu0
        %v1715 = vadd.f32 0.0, %v1714
        %v1716 = vpop.f32.mrf.mxu0
        %v1717 = vadd.f32 0.0, %v1716
        %v1718 = vpop.f32.mrf.mxu0
        %v1719 = vadd.f32 0.0, %v1718
        %v1720 = vpop.f32.mrf.mxu0
        %v1721 = vadd.f32 0.0, %v1720
        %1722 = vmatprep.mubr.bf16.mxu0 %v1075
        %1723 = vmatmul.mubr.bf16.gmra.mxu0 %v1074
        %v1724 = vpop.f32.mrf.mxu0
        %v1725 = vadd.f32 0.0, %v1724
        %v1726 = vpop.f32.mrf.mxu0
        %v1727 = vadd.f32 0.0, %v1726
        %v1728 = vpop.f32.mrf.mxu0
        %v1729 = vadd.f32 0.0, %v1728
        %v1730 = vpop.f32.mrf.mxu0
        %v1731 = vadd.f32 0.0, %v1730
        %1732 = vmatprep.mubr.bf16.mxu0 %v1077
        %1733 = vmatmul.mubr.bf16.gmra.mxu0 %v1076
        %v1734 = vpop.f32.mrf.mxu0
        %v1735 = vadd.f32 0.0, %v1734
        %v1736 = vpop.f32.mrf.mxu0
        %v1737 = vadd.f32 0.0, %v1736
        %v1738 = vpop.f32.mrf.mxu0
        %v1739 = vadd.f32 0.0, %v1738
        %v1740 = vpop.f32.mrf.mxu0
        %v1741 = vadd.f32 0.0, %v1740
        %1742 = vmatprep.mubr.bf16.mxu0 %v1079
        %1743 = vmatmul.mubr.bf16.gmra.mxu0 %v1078
        %v1744 = vpop.f32.mrf.mxu0
        %v1745 = vadd.f32 0.0, %v1744
        %v1746 = vpop.f32.mrf.mxu0
        %v1747 = vadd.f32 0.0, %v1746
        %v1748 = vpop.f32.mrf.mxu0
        %v1749 = vadd.f32 0.0, %v1748
        %v1750 = vpop.f32.mrf.mxu0
        %v1751 = vadd.f32 0.0, %v1750
        %1752 = vmatprep.mubr.bf16.mxu0 %v1081
        %1753 = vmatmul.mubr.bf16.gmra.mxu0 %v1080
        %v1754 = vpop.f32.mrf.mxu0
        %v1755 = vadd.f32 0.0, %v1754
        %v1756 = vpop.f32.mrf.mxu0
        %v1757 = vadd.f32 0.0, %v1756
        %v1758 = vpop.f32.mrf.mxu0
        %v1759 = vadd.f32 0.0, %v1758
        %v1760 = vpop.f32.mrf.mxu0
        %v1761 = vadd.f32 0.0, %v1760
        %1762 = vmatprep.mubr.bf16.mxu0 %v1083
        %1763 = vmatmul.mubr.bf16.gmra.mxu0 %v1082
        %v1764 = vpop.f32.mrf.mxu0
        %v1765 = vadd.f32 0.0, %v1764
        %v1766 = vpop.f32.mrf.mxu0
        %v1767 = vadd.f32 0.0, %v1766
        %v1768 = vpop.f32.mrf.mxu0
        %v1769 = vadd.f32 0.0, %v1768
        %v1770 = vpop.f32.mrf.mxu0
        %v1771 = vadd.f32 0.0, %v1770
        %1772 = vmatprep.mubr.bf16.mxu0 %v1085
        %1773 = vmatmul.mubr.bf16.gmra.mxu0 %v1084
        %v1774 = vpop.f32.mrf.mxu0
        %v1775 = vadd.f32 0.0, %v1774
        %v1776 = vpop.f32.mrf.mxu0
        %v1777 = vadd.f32 0.0, %v1776
        %v1778 = vpop.f32.mrf.mxu0
        %v1779 = vadd.f32 0.0, %v1778
        %v1780 = vpop.f32.mrf.mxu0
        %v1781 = vadd.f32 0.0, %v1780
        %1782 = vmatprep.mubr.bf16.mxu0 %v1087
        %1783 = vmatmul.mubr.bf16.gmra.mxu0 %v1086
        %v1784 = vpop.f32.mrf.mxu0
        %v1785 = vadd.f32 0.0, %v1784
        %v1786 = vpop.f32.mrf.mxu0
        %v1787 = vadd.f32 0.0, %v1786
        %v1788 = vpop.f32.mrf.mxu0
        %v1789 = vadd.f32 0.0, %v1788
        %v1790 = vpop.f32.mrf.mxu0
        %v1791 = vadd.f32 0.0, %v1790
        %1792 = vmatprep.mubr.bf16.mxu0 %v1089
        %1793 = vmatmul.mubr.bf16.gmra.mxu0 %v1088
        %v1794 = vpop.f32.mrf.mxu0
        %v1795 = vadd.f32 0.0, %v1794
        %v1796 = vpop.f32.mrf.mxu0
        %v1797 = vadd.f32 0.0, %v1796
        %v1798 = vpop.f32.mrf.mxu0
        %v1799 = vadd.f32 0.0, %v1798
        %v1800 = vpop.f32.mrf.mxu0
        %v1801 = vadd.f32 0.0, %v1800
        %1802 = vmatprep.mubr.bf16.mxu0 %v1091
        %1803 = vmatmul.mubr.bf16.gmra.mxu0 %v1090
        %v1804 = vpop.f32.mrf.mxu0
        %v1805 = vadd.f32 0.0, %v1804
        %v1806 = vpop.f32.mrf.mxu0
        %v1807 = vadd.f32 0.0, %v1806
        %v1808 = vpop.f32.mrf.mxu0
        %v1809 = vadd.f32 0.0, %v1808
        %v1810 = vpop.f32.mrf.mxu0
        %v1811 = vadd.f32 0.0, %v1810
        %1812 = vdwg.mxu0
        %v1813 = vadd.f32 %v1364, %v1655
        %v1814 = vadd.f32 %v1365, %v1657
        %v1815 = vadd.f32 %v1366, %v1659
        %v1816 = vadd.f32 %v1367, %v1661
        %v1817 = vadd.f32 %v1368, %v1665
        %v1818 = vadd.f32 %v1369, %v1667
        %v1819 = vadd.f32 %v1370, %v1669
        %v1820 = vadd.f32 %v1371, %v1671
        %v1821 = vadd.f32 %v1372, %v1675
        %v1822 = vadd.f32 %v1373, %v1677
        %v1823 = vadd.f32 %v1374, %v1679
        %v1824 = vadd.f32 %v1375, %v1681
        %v1825 = vadd.f32 %v1376, %v1685
        %v1826 = vadd.f32 %v1377, %v1687
        %v1827 = vadd.f32 %v1378, %v1689
        %v1828 = vadd.f32 %v1379, %v1691
        %v1829 = vadd.f32 %v1380, %v1695
        %v1830 = vadd.f32 %v1381, %v1697
        %v1831 = vadd.f32 %v1382, %v1699
        %v1832 = vadd.f32 %v1383, %v1701
        %v1833 = vadd.f32 %v1384, %v1705
        %v1834 = vadd.f32 %v1385, %v1707
        %v1835 = vadd.f32 %v1386, %v1709
        %v1836 = vadd.f32 %v1387, %v1711
        %v1837 = vadd.f32 %v1388, %v1715
        %v1838 = vadd.f32 %v1389, %v1717
        %v1839 = vadd.f32 %v1390, %v1719
        %v1840 = vadd.f32 %v1391, %v1721
        %v1841 = vadd.f32 %v1392, %v1725
        %v1842 = vadd.f32 %v1393, %v1727
        %v1843 = vadd.f32 %v1394, %v1729
        %v1844 = vadd.f32 %v1395, %v1731
        %v1845 = vadd.f32 %v1396, %v1735
        %v1846 = vadd.f32 %v1397, %v1737
        %v1847 = vadd.f32 %v1398, %v1739
        %v1848 = vadd.f32 %v1399, %v1741
        %v1849 = vadd.f32 %v1400, %v1745
        %v1850 = vadd.f32 %v1401, %v1747
        %v1851 = vadd.f32 %v1402, %v1749
        %v1852 = vadd.f32 %v1403, %v1751
        %v1853 = vadd.f32 %v1404, %v1755
        %v1854 = vadd.f32 %v1405, %v1757
        %v1855 = vadd.f32 %v1406, %v1759
        %v1856 = vadd.f32 %v1407, %v1761
        %v1857 = vadd.f32 %v1408, %v1765
        %v1858 = vadd.f32 %v1409, %v1767
        %v1859 = vadd.f32 %v1410, %v1769
        %v1860 = vadd.f32 %v1411, %v1771
        %v1861 = vadd.f32 %v1412, %v1775
        %v1862 = vadd.f32 %v1413, %v1777
        %v1863 = vadd.f32 %v1414, %v1779
        %v1864 = vadd.f32 %v1415, %v1781
        %v1865 = vadd.f32 %v1416, %v1785
        %v1866 = vadd.f32 %v1417, %v1787
        %v1867 = vadd.f32 %v1418, %v1789
        %v1868 = vadd.f32 %v1419, %v1791
        %v1869 = vadd.f32 %v1420, %v1795
        %v1870 = vadd.f32 %v1421, %v1797
        %v1871 = vadd.f32 %v1422, %v1799
        %v1872 = vadd.f32 %v1423, %v1801
        %v1873 = vadd.f32 %v1424, %v1805
        %v1874 = vadd.f32 %v1425, %v1807
        %v1875 = vadd.f32 %v1426, %v1809
        %v1876 = vadd.f32 %v1427, %v1811
        %1877 = vst [vmem:[%s397] sm:$0xff] %v1813
        %1878 = vst [vmem:[%s397 + $0x8] sm:$0xff] %v1814
        %1879 = vst [vmem:[%s397 + $0x10] sm:$0xff] %v1815
        %1880 = vst [vmem:[%s397 + $0x18] sm:$0xff] %v1816
        %1881 = vst [vmem:[%s397 + $0x20] sm:$0xff] %v1817
        %1882 = vst [vmem:[%s397 + $0x28] sm:$0xff] %v1818
        %1883 = vst [vmem:[%s397 + $0x30] sm:$0xff] %v1819
        %1884 = vst [vmem:[%s397 + $0x38] sm:$0xff] %v1820
        %1885 = vst [vmem:[%s397 + $0x40] sm:$0xff] %v1821
        %1886 = vst [vmem:[%s397 + $0x48] sm:$0xff] %v1822
        %1887 = vst [vmem:[%s397 + $0x50] sm:$0xff] %v1823
        %1888 = vst [vmem:[%s397 + $0x58] sm:$0xff] %v1824
        %1889 = vst [vmem:[%s397 + $0x60] sm:$0xff] %v1825
        %1890 = vst [vmem:[%s397 + $0x68] sm:$0xff] %v1826
        %1891 = vst [vmem:[%s397 + $0x70] sm:$0xff] %v1827
        %1892 = vst [vmem:[%s397 + $0x78] sm:$0xff] %v1828
        %1893 = vst [vmem:[%s397 + $0x80] sm:$0xff] %v1829
        %1894 = vst [vmem:[%s397 + $0x88] sm:$0xff] %v1830
        %1895 = vst [vmem:[%s397 + $0x90] sm:$0xff] %v1831
        %1896 = vst [vmem:[%s397 + $0x98] sm:$0xff] %v1832
        %1897 = vst [vmem:[%s397 + $0xa0] sm:$0xff] %v1833
        %1898 = vst [vmem:[%s397 + $0xa8] sm:$0xff] %v1834
        %1899 = vst [vmem:[%s397 + $0xb0] sm:$0xff] %v1835
        %1900 = vst [vmem:[%s397 + $0xb8] sm:$0xff] %v1836
        %1901 = vst [vmem:[%s397 + $0xc0] sm:$0xff] %v1837
        %1902 = vst [vmem:[%s397 + $0xc8] sm:$0xff] %v1838
        %1903 = vst [vmem:[%s397 + $0xd0] sm:$0xff] %v1839
        %1904 = vst [vmem:[%s397 + $0xd8] sm:$0xff] %v1840
        %1905 = vst [vmem:[%s397 + $0xe0] sm:$0xff] %v1841
        %1906 = vst [vmem:[%s397 + $0xe8] sm:$0xff] %v1842
        %1907 = vst [vmem:[%s397 + $0xf0] sm:$0xff] %v1843
        %1908 = vst [vmem:[%s397 + $0xf8] sm:$0xff] %v1844
        %1909 = vst [vmem:[%s397 + $0x100] sm:$0xff] %v1845
        %1910 = vst [vmem:[%s397 + $0x108] sm:$0xff] %v1846
        %1911 = vst [vmem:[%s397 + $0x110] sm:$0xff] %v1847
        %1912 = vst [vmem:[%s397 + $0x118] sm:$0xff] %v1848
        %1913 = vst [vmem:[%s397 + $0x120] sm:$0xff] %v1849
        %1914 = vst [vmem:[%s397 + $0x128] sm:$0xff] %v1850
        %1915 = vst [vmem:[%s397 + $0x130] sm:$0xff] %v1851
        %1916 = vst [vmem:[%s397 + $0x138] sm:$0xff] %v1852
        %1917 = vst [vmem:[%s397 + $0x140] sm:$0xff] %v1853
        %1918 = vst [vmem:[%s397 + $0x148] sm:$0xff] %v1854
        %1919 = vst [vmem:[%s397 + $0x150] sm:$0xff] %v1855
        %1920 = vst [vmem:[%s397 + $0x158] sm:$0xff] %v1856
        %1921 = vst [vmem:[%s397 + $0x160] sm:$0xff] %v1857
        %1922 = vst [vmem:[%s397 + $0x168] sm:$0xff] %v1858
        %1923 = vst [vmem:[%s397 + $0x170] sm:$0xff] %v1859
        %1924 = vst [vmem:[%s397 + $0x178] sm:$0xff] %v1860
        %1925 = vst [vmem:[%s397 + $0x180] sm:$0xff] %v1861
        %1926 = vst [vmem:[%s397 + $0x188] sm:$0xff] %v1862
        %1927 = vst [vmem:[%s397 + $0x190] sm:$0xff] %v1863
        %1928 = vst [vmem:[%s397 + $0x198] sm:$0xff] %v1864
        %1929 = vst [vmem:[%s397 + $0x1a0] sm:$0xff] %v1865
        %1930 = vst [vmem:[%s397 + $0x1a8] sm:$0xff] %v1866
        %1931 = vst [vmem:[%s397 + $0x1b0] sm:$0xff] %v1867
        %1932 = vst [vmem:[%s397 + $0x1b8] sm:$0xff] %v1868
        %1933 = vst [vmem:[%s397 + $0x1c0] sm:$0xff] %v1869
        %1934 = vst [vmem:[%s397 + $0x1c8] sm:$0xff] %v1870
        %1935 = vst [vmem:[%s397 + $0x1d0] sm:$0xff] %v1871
        %1936 = vst [vmem:[%s397 + $0x1d8] sm:$0xff] %v1872
        %1937 = vst [vmem:[%s397 + $0x1e0] sm:$0xff] %v1873
        %1938 = vst [vmem:[%s397 + $0x1e8] sm:$0xff] %v1874
        %1939 = vst [vmem:[%s397 + $0x1f0] sm:$0xff] %v1875
        %1940 = vst [vmem:[%s397 + $0x1f8] sm:$0xff] %v1876
        %p1941 = scmp.eq.s32.totalorder %s34, 0
        %p1942 = pnand %p1941, %p1284
        %p1943 = pneg %p1942
        // Predicated region
        $region57: #{tpu_custom_call.1} parent=35 // pred_check
          _
        $region58: #{tpu_custom_call.1} parent=35 // pred_check_branch
          %1945 = sbr.rel (%p1942) target = $region60
        $region59: #{tpu_custom_call.1} parent=35 // pred_region
          %1946 = vst [vmem:[#allocation12] sm:$0xf] 0.0
        $region60: #{tpu_custom_call.1} parent=35 // pred_fallthru
          _
        %v1947 = vmax.f32 %v996, %v1000
        %v1948 = vmax.f32 %v998, %v1002
        %v1949 = vmax.f32 %v1947, %v1004
        %v1950 = vmax.f32 %v1948, %v1006
        %v1951 = vmax.f32 %v1949, %v1008
        %v1952 = vmax.f32 %v1950, %v1010
        %v1953 = vmax.f32 %v1951, %v1012
        %v1954 = vmax.f32 %v1952, %v1014
        %v1955 = vmax.f32 %v1953, %v1016
        %v1956 = vmax.f32 %v1954, %v1018
        %v1957 = vmax.f32 %v1955, %v1020
        %v1958 = vmax.f32 %v1956, %v1022
        %v1959 = vmax.f32 %v1957, %v1024
        %v1960 = vmax.f32 %v1958, %v1026
        %v1961 = vmax.f32 %v1959, %v1028
        %v1962 = vmax.f32 %v1960, %v1030
        %v1963 = vmax.f32 %v1961, %v1032
        %v1964 = vmax.f32 %v1962, %v1034
        %v1965 = vmax.f32 %v1963, %v1036
        %v1966 = vmax.f32 %v1964, %v1038
        %v1967 = vmax.f32 %v1965, %v1040
        %v1968 = vmax.f32 %v1966, %v1042
        %v1969 = vmax.f32 %v1967, %v1044
        %v1970 = vmax.f32 %v1968, %v1046
        %v1971 = vmax.f32 %v1969, %v1048
        %v1972 = vmax.f32 %v1970, %v1050
        %v1973 = vmax.f32 %v1971, %v1052
        %v1974 = vmax.f32 %v1972, %v1054
        %v1975 = vmax.f32 %v1973, %v1056
        %v1976 = vmax.f32 %v1974, %v1058
        %v1977 = vmax.f32 %v1975, %v1976
        %v1978 = vrot.slane %v1977, 4
        %v1979 = vmax.f32 %v1977, %v1978
        %v1980 = vrot.slane %v1979, 2
        %v1981 = vmax.f32 %v1979, %v1980
        %v1982 = vrot.slane %v1981, 1
        %v1983 = vmax.f32 %v1981, %v1982
        %v1984 = vmax.f32 %v997, %v1001
        %v1985 = vmax.f32 %v999, %v1003
        %v1986 = vmax.f32 %v1984, %v1005
        %v1987 = vmax.f32 %v1985, %v1007
        %v1988 = vmax.f32 %v1986, %v1009
        %v1989 = vmax.f32 %v1987, %v1011
        %v1990 = vmax.f32 %v1988, %v1013
        %v1991 = vmax.f32 %v1989, %v1015
        %v1992 = vmax.f32 %v1990, %v1017
        %v1993 = vmax.f32 %v1991, %v1019
        %v1994 = vmax.f32 %v1992, %v1021
        %v1995 = vmax.f32 %v1993, %v1023
        %v1996 = vmax.f32 %v1994, %v1025
        %v1997 = vmax.f32 %v1995, %v1027
        %v1998 = vmax.f32 %v1996, %v1029
        %v1999 = vmax.f32 %v1997, %v1031
        %v2000 = vmax.f32 %v1998, %v1033
        %v2001 = vmax.f32 %v1999, %v1035
        %v2002 = vmax.f32 %v2000, %v1037
        %v2003 = vmax.f32 %v2001, %v1039
        %v2004 = vmax.f32 %v2002, %v1041
        %v2005 = vmax.f32 %v2003, %v1043
        %v2006 = vmax.f32 %v2004, %v1045
        %v2007 = vmax.f32 %v2005, %v1047
        %v2008 = vmax.f32 %v2006, %v1049
        %v2009 = vmax.f32 %v2007, %v1051
        %v2010 = vmax.f32 %v2008, %v1053
        %v2011 = vmax.f32 %v2009, %v1055
        %v2012 = vmax.f32 %v2010, %v1057
        %v2013 = vmax.f32 %v2011, %v1059
        %v2014 = vmax.f32 %v2012, %v2013
        %v2015 = vrot.slane %v2014, 4
        %v2016 = vmax.f32 %v2014, %v2015
        %v2017 = vrot.slane %v2016, 2
        %v2018 = vmax.f32 %v2016, %v2017
        %v2019 = vrot.slane %v2018, 1
        %v2020 = vmax.f32 %v2018, %v2019
        %s2021 = sshra.s32 %s35, 1
        %s2022 = sand.u32 %s35, 1
        %s2023 = sshra.s32 %s35, 1
        %s2024 = sand.u32 %s35, 1
        %s2025 = smul.u32 %s2021, 2
        %s2026 = smul.u32 %s2025, 2
        %s2027 = sadd.s32 %s2026, %s2024
        %s2028 = scalar_lea.vmem [#allocation12], %s2027
        %v2029 = vld [vmem:[%s2028] ss:$2 sm:$0x3]
        %v2032 = vcombine.low %v1983, %v2020
        %v2034 = vunpack.c.l.s4 1966171168
        %v2035 = vunpack.c.0.s8 %v2034
        %v2036 = vlaneseq
        %v2037 = vshrl.u32 %v2036, 7
        %v2038 = vsub.s32 %v2035, %v2037
        %v2039 = vrot.slane %v2032, %v2038
        %v2041 = vunpack.c.l.s4 1966171168
        %v2042 = vunpack.c.0.s8 %v2041
        %v2043 = vlaneseq
        %v2044 = vshrl.u32 %v2043, 7
        %v2045 = vsub.s32 %v2042, %v2044
        %v2046 = vrot.slane %v2039, %v2045
        %v2048 = vmax.f32 %v2029, %v2046
        %v2049 = vlaneseq
        %vm2050 = vcmp.ge.s32.totalorder %v2049, 0
        %vm2051 = vcmp.lt.s32.totalorder %v2049, 256
        %vm2052 = vmand %vm2050, %vm2051
        %2053 = vst.msk [vmem:[%s2028] ss:$2 sm:$0x3] %vm2052, %v2048
        %s2054 = sand.u32 %s162, 1
        %s2055 = scalar_lea.sflag [#allocation4], %s2054
        %s2056 = sand.u32 %s162, 1
        %s2057 = smul.addr %s2056, 512
        %s2058 = scalar_lea.vmem [#allocation9], %s2057
        %s2059 = sand.u32 %s28, 1
        %s2060 = scalar_lea.sflag [#allocation11], %s2059
        %s2061 = sand.u32 %s194, 1
        %s2062 = smul.addr %s2061, 256
        %s2063 = scalar_lea.vmem [#allocation10], %s2062
        // Predicated region
        $region61: #{tpu_custom_call.1} parent=35 // pred_check
          %p2064 = pneg %p172
        $region62: #{tpu_custom_call.1} parent=35 // pred_check_branch
          %2066 = sbr.rel (%p2064) target = $region64
        $region63: #{tpu_custom_call.1} parent=35 // pred_region
          %s2067 = smul.u32 %s33, 2
          %s2068 = sadd.s32 %s2067, %s34
          %s2069 = smul.u32 32, %s2068
          %s2071 = ssub.s32 8192, 8192
          %2072 = vsyncadd %s2055, %s2071
          %s2073 = smul.addr %s2069, 2
          %s2074 = smul.addr %s2073, 128
          %s2075 = scalar_lea.hbm %s4, %s2074
          %s2076 = sshll.u32 %s2058, 4
          %s2077 = int_to_ptr.vmem [resolvable:$true] %s2076
          %2082 = dma.vmem_to_hbm [thread:$0]  %s2077, 8192, %s2075, %s2055, 256, 256, 16
        $region64: #{tpu_custom_call.1} parent=35 // pred_fallthru
          _
        // Predicated region
        $region65: #{tpu_custom_call.1} parent=35 // pred_check
          %p2083 = pneg %p204
        $region66: #{tpu_custom_call.1} parent=35 // pred_check_branch
          %2085 = sbr.rel (%p2083) target = $region68
        $region67: #{tpu_custom_call.1} parent=35 // pred_region
          %s2086 = smul.u32 %s33, 2
          %s2087 = sadd.s32 %s2086, %s34
          %s2088 = smul.u32 32, %s2087
          %s2089 = smul.u32 2, %s35
          %s2091 = ssub.s32 4096, 4096
          %2092 = vsyncadd %s2060, %s2091
          %s2093 = smul.addr %s2088, 4
          %s2094 = sadd.s32 %s2089, %s2093
          %s2095 = smul.addr %s2094, 64
          %s2096 = scalar_lea.hbm %s5, %s2095
          %s2097 = sshll.u32 %s2063, 4
          %s2098 = int_to_ptr.vmem [resolvable:$true] %s2097
          %2103 = dma.vmem_to_hbm [thread:$0]  %s2098, 4096, %s2096, %s2060, 128, 256, 8
        $region68: #{tpu_custom_call.1} parent=35 // pred_fallthru
          _
        // Predicated region
        $region69: #{tpu_custom_call.1} parent=35 // pred_check
          %p2104 = pneg %p230
        $region70: #{tpu_custom_call.1} parent=35 // pred_check_branch
          %2106 = sbr.rel (%p2104) target = $region72
        $region71: #{tpu_custom_call.1} parent=35 // pred_region
          %s2108 = ssub.s32 64, 64
          %2109 = vsyncadd [#allocation11], %s2108
          %s2110 = smul.addr %s33, 2
          %s2111 = smul.addr %s2110, 32
          %s2112 = scalar_lea.hbm %s6, %s2111
          %s2114 = sshll.u32 [#allocation12], 4
          %s2115 = int_to_ptr.vmem [resolvable:$true] %s2114
          %2117 = dma.vmem_to_hbm [thread:$0]  %s2115, 64, %s2112, [#allocation11]
        $region72: #{tpu_custom_call.1} parent=35 // pred_fallthru
          _
        // Predicated region
        $region73: #{tpu_custom_call.1} parent=35 // pred_check
          %p2118 = pneg %p230
        $region74: #{tpu_custom_call.1} parent=35 // pred_check_branch
          %2120 = sbr.rel (%p2118) target = $region76
        $region75: #{tpu_custom_call.1} parent=35 // pred_region
          %2121 = dma.done [#allocation11], 64
        $region76: #{tpu_custom_call.1} parent=35 // pred_fallthru
          _
      $region36: #{tpu_custom_call.1} parent=5 // pred_fallthru
        _
      %p2122 = scmp.le.s32.totalorder 2, %s23
      // Predicated region
      $region77: #{tpu_custom_call.1} parent=5 // pred_check
        %p2123 = pneg %p2122
      $region78: #{tpu_custom_call.1} parent=5 // pred_check_branch
        %2125 = sbr.rel (%p2123) target = $region80
      $region79: #{tpu_custom_call.1} parent=5 // pred_region
        %s2126 = ssub.s32 %s23, 2
        // Predicated region
        $region81: #{tpu_custom_call.1} parent=79 // pred_check
          %p2127 = pneg %p178
        $region82: #{tpu_custom_call.1} parent=79 // pred_check_branch
          %2129 = sbr.rel (%p2127) target = $region84
        $region83: #{tpu_custom_call.1} parent=79 // pred_region
          %s2130 = sand.u32 %s163, 1
          %s2131 = scalar_lea.sflag [#allocation4], %s2130
          %s2132 = sand.u32 %s163, 1
          %s2133 = smul.addr %s2132, 512
          %s2134 = scalar_lea.vmem [#allocation9], %s2133
          %2135 = dma.done %s2131, 8192
        $region84: #{tpu_custom_call.1} parent=79 // pred_fallthru
          _
        // Predicated region
        $region85: #{tpu_custom_call.1} parent=79 // pred_check
          %p2136 = pneg %p210
        $region86: #{tpu_custom_call.1} parent=79 // pred_check_branch
          %2138 = sbr.rel (%p2136) target = $region88
        $region87: #{tpu_custom_call.1} parent=79 // pred_region
          %s2139 = sand.u32 %s29, 1
          %s2140 = scalar_lea.sflag [#allocation11], %s2139
          %s2141 = sand.u32 %s195, 1
          %s2142 = smul.addr %s2141, 256
          %s2143 = scalar_lea.vmem [#allocation10], %s2142
          %2144 = dma.done %s2140, 4096
        $region88: #{tpu_custom_call.1} parent=79 // pred_fallthru
          _
      $region80: #{tpu_custom_call.1} parent=5 // pred_fallthru
        _
    $region6: #{tpu_custom_call.1} parent=1 // loop_footer
      %s27 = sadd.s32 1, %s23
    $region7: #{tpu_custom_call.1} parent=1 // loop_footer_branch
      %22 = sbr.rel target = $region3
    $region8: #{tpu_custom_call.1} parent=1 // loop_exit
      _
    %2145 = vsyncpa [#allocation3], 1
    %s2146 = scalar_lea.sflag [#allocation3], 1
    %2147 = vsyncpa %s2146, 1
    %2148 = vsyncpa [#allocation6], 1
    %2149 = vsyncpa [#allocation4], 1
    %s2150 = scalar_lea.sflag [#allocation4], 1
    %2151 = vsyncpa %s2150, 1
    %2152 = vsyncpa [#allocation11], 1
    %s2153 = scalar_lea.sflag [#allocation11], 1
    %2154 = vsyncpa %s2153, 1

</llo_original>
